<compile_context>
chip_gen: v6e
topology: v6e:2x2x1
jax: 0.10.0
libtpu: 0.0.40
codegen_flags: <defaults>
</compile_context>

<pallas_src>
import functools

import jax
import jax.numpy as jnp
import numpy as np
from jax import lax
from jax.experimental import pallas as pl
from jax.experimental.pallas import tpu as pltpu

EPS = 1e-5  # PyTorch GroupNorm default eps


def _conv_block_kernel(x_ref, e1_ref, g1_ref, b1_ref, w1_ref, c1b_ref,
                       e2_ref, g2_ref, b2_ref, w2_ref, c2b_ref,
                       out_ref, *, H, W):
    HW = H * W

    def group_norm_relu(v, e_ref, gamma_ref, beta_ref):
        # v: (Ch, HW) f32.  Exact-f32 group statistics on VPU/XLU (no MXU
        # rounding): lane-sum per channel, group-sum via 0/1 expand matrix +
        # sublane reduce, broadcast back per channel.  Single pass sum/sumsq.
        e = e_ref[...]                                             # (Ch, G) 0/1
        ch, g = e.shape
        inv_n = 1.0 / float(HW * (ch // g))
        s = jnp.sum(v, axis=1, keepdims=True)                      # (Ch, 1)
        ss = jnp.sum(v * v, axis=1, keepdims=True)                 # (Ch, 1)

        def reduce_expand(col):
            gsum = jnp.sum(col * e, axis=0, keepdims=True)         # (1, G)
            return jnp.sum(e * gsum, axis=1, keepdims=True)        # (Ch, 1)

        mean = reduce_expand(s) * inv_n
        var = jnp.maximum(reduce_expand(ss) * inv_n - mean * mean, 0.0)
        scale = gamma_ref[...] * lax.rsqrt(var + EPS)              # (Ch, 1)
        shift = beta_ref[...] - mean * scale
        # Single fused traversal of the big tensor: relu(v * scale + shift).
        return jnp.maximum(v * scale + shift, 0.0)

    # ---- GroupNorm1 + ReLU (f32 elementwise; x arrives bf16) -----------------
    x = x_ref[0].astype(jnp.float32)                               # (C, HW)
    y = group_norm_relu(x, e1_ref, g1_ref, b1_ref)

    # ---- Conv 1x1 == channel matmul (bf16 MXU operands, f32 accumulate) ------
    z = jnp.dot(w1_ref[...], y.astype(jnp.bfloat16),
                preferred_element_type=jnp.float32) + c1b_ref[...]  # (C2, HW)

    # ---- GroupNorm2 + ReLU ----------------------------------------------------
    z = group_norm_relu(z, e2_ref, g2_ref, b2_ref)                 # (C2, HW)
    zb = z.astype(jnp.bfloat16)                                    # cast ONCE

    # ---- Conv 3x3 (padding=1): 9 accumulated per-tap matmuls; roll + boundary
    #      mask are applied to the SMALL (Cout, HW) partials, never to z. ------
    # In-kernel row/col decomposition of the flat lane index (float math only,
    # +0.5 guards the floor against representation error of 1/W).
    pos = lax.broadcasted_iota(jnp.int32, (1, HW), 1).astype(jnp.float32)
    row = jnp.floor((pos + 0.5) * (1.0 / W))                       # (1, HW)
    col = pos - row * W                                            # (1, HW)

    acc = None
    for k in range(9):
        kh, kw = divmod(k, 3)
        dh, dw = kh - 1, kw - 1
        u = jnp.dot(w2_ref[k], zb,
                    preferred_element_type=jnp.float32)            # (Cout, HW)
        d = dh * W + dw                       # flat spatial offset of this tap
        if d != 0:
            u = pltpu.roll(u, (-d) % HW, axis=1)
        # Boundary mask at output positions (only the needed comparisons).
        valid = None
        if dh < 0:
            valid = row >= float(-dh)
        elif dh > 0:
            valid = row < float(H - dh)
        if dw < 0:
            c = col >= float(-dw)
            valid = c if valid is None else valid & c
        elif dw > 0:
            c = col < float(W - dw)
            valid = c if valid is None else valid & c
        if valid is not None:
            u = jnp.where(valid, u, 0.0)
        acc = u if acc is None else acc + u

    out_ref[0] = acc + c2b_ref[...]                                # (Cout, HW)


def conv_block_forward(x_nchw, params, num_groups):
    N, C, H, W = x_nchw.shape
    HW = H * W
    G = num_groups
    C2 = params["conv1_w"].shape[0]      # 4 * growthRate
    Cout = params["conv2_w"].shape[0]    # growthRate
    assert C % G == 0 and C2 % G == 0, "GroupNorm requires channels % groups == 0"
    # Performance note: the lane-dense fast path expects HW % 128 == 0 and
    # channel counts multiples of 8; other shapes still compile but hit
    # padded/masked layouts.

    # NCHW with spatial flattened into the fast (lane) dim; bf16 halves the
    # dominant HBM read (GroupNorm math is done in f32 inside the kernel).
    x = x_nchw.reshape(N, C, HW).astype(jnp.bfloat16)

    # 0/1 group "expand" matrix (Ch, G): channel c belongs to group c // (Ch/G).
    def expand_mat(nc):
        cg = nc // G
        return jnp.asarray(
            ((np.arange(nc) // cg)[:, None] == np.arange(G)[None, :]).astype(np.float32))

    e1 = expand_mat(C)
    e2 = expand_mat(C2)

    # Conv weights pre-arranged for (out, in) @ (in, HW) matmuls; bf16 operands.
    w1 = params["conv1_w"].reshape(C2, C).astype(jnp.bfloat16)              # (C2, C)
    # (Cout, C2, 3, 3) -> (9, Cout, C2): one (Cout, C2) slab per tap k = kh*3+kw.
    w2 = jnp.transpose(params["conv2_w"], (2, 3, 0, 1)).reshape(
        9, Cout, C2).astype(jnp.bfloat16)

    col = lambda a: jnp.asarray(a, jnp.float32).reshape(-1, 1)              # (Ch, 1)

    def full(shape):
        zeros = (0,) * len(shape)
        return pl.BlockSpec(shape, lambda n: zeros)

    # Real per-step VMEM residency: double-buffered grid blocks + (double-
    # buffered) grid-invariant operands + in-kernel temporaries, with 2x
    # headroom, capped below v7x's 64 MiB physical VMEM.
    f32b, bf16b = 4, 2
    const_bytes = ((C + C2) * G * f32b                      # expand matrices
                   + (2 * C + 3 * C2 + Cout) * f32b         # gammas/betas/biases
                   + (C2 * C + 9 * Cout * C2) * bf16b)      # conv weights
    io_block_bytes = C * HW * bf16b + Cout * HW * f32b      # x / out blocks
    temp_bytes = (2 * C * HW * f32b                         # x(f32) + GN1 output
                  + C2 * HW * (f32b + bf16b)                # z(f32) + z(bf16)
                  + 2 * Cout * HW * f32b)                   # conv2 partial + acc
    est = 2 * (const_bytes + io_block_bytes) + temp_bytes
    vmem_limit = int(min(48 * 2**20, max(8 * 2**20, 2 * est)))
    # TODO(synk): for very large feature maps (temp_bytes approaching ~40 MiB)
    # add an HW tile axis (row-aligned, W-lane halo) with a separate GN1 stats
    # pass so the kernel still fits v7x's 64 MiB VMEM and megacore gets more
    # parallel steps.
    # TODO(synk): grid-invariant operands could request single buffering
    # (pipeline_mode=pl.Buffered(1)) to save a few KiB of VMEM per duplicate.

    kernel = functools.partial(_conv_block_kernel, H=H, W=W)

    out = pl.pallas_call(
        kernel,
        out_shape=jax.ShapeDtypeStruct((N, Cout, HW), jnp.float32),
        grid_spec=pltpu.PrefetchScalarGridSpec(
            num_scalar_prefetch=0,
            grid=(N,),
            in_specs=[
                pl.BlockSpec((1, C, HW), lambda n: (n, 0, 0)),   # x (per sample)
                full((C, G)),                                    # GN1 expand
                full((C, 1)), full((C, 1)),                      # gamma1 / beta1
                full((C2, C)), full((C2, 1)),                    # conv1 w / b
                full((C2, G)),                                   # GN2 expand
                full((C2, 1)), full((C2, 1)),                    # gamma2 / beta2
                full((9, Cout, C2)), full((Cout, 1)),            # conv2 w / b
            ],
            out_specs=pl.BlockSpec((1, Cout, HW), lambda n: (n, 0, 0)),
        ),
        compiler_params=pltpu.CompilerParams(
            dimension_semantics=("parallel",),
            vmem_limit_bytes=vmem_limit,
        ),
    )(x, e1, col(params["gn1_w"]), col(params["gn1_b"]),
      w1, col(params["conv1_b"]),
      e2, col(params["gn2_w"]), col(params["gn2_b"]),
      w2, col(params["conv2_b"]))

    # (N, Cout, HW) is already NCHW-flattened -- no final transpose.
    return out.reshape(N, Cout, H, W)


def _reference(x, params, num_groups):
    """Pure-JAX f32 reference matching torch semantics (NCHW)."""
    def gn(y, gamma, beta):
        n, c, h, w = y.shape
        yg = y.reshape(n, num_groups, -1)
        m = jnp.mean(yg, axis=2, keepdims=True)
        v = jnp.mean((yg - m) ** 2, axis=2, keepdims=True)     # biased variance
        yn = ((yg - m) * lax.rsqrt(v + EPS)).reshape(n, c, h, w)
        return yn * gamma[None, :, None, None] + beta[None, :, None, None]

    dn = ("NCHW", "OIHW", "NCHW")
    y = jax.nn.relu(gn(x, params["gn1_w"], params["gn1_b"]))
    y = lax.conv_general_dilated(y, params["conv1_w"], (1, 1), "VALID",
                                 dimension_numbers=dn)
    y = y + params["conv1_b"][None, :, None, None]
    y = jax.nn.relu(gn(y, params["gn2_w"], params["gn2_b"]))
    y = lax.conv_general_dilated(y, params["conv2_w"], (1, 1), [(1, 1), (1, 1)],
                                 dimension_numbers=dn)
    return y + params["conv2_b"][None, :, None, None]


if __name__ == "__main__":
    key = jax.random.PRNGKey(0)
    N, C, H, W = 2, 8, 16, 16
    num_groups, growth = 4, 8
    C2, Cout = 4 * growth, growth

    ks = jax.random.split(key, 9)
    params = {
        "gn1_w": 1.0 + 0.5 * jax.random.normal(ks[0], (C,), jnp.float32),
        "gn1_b": 0.1 * jax.random.normal(ks[1], (C,), jnp.float32),
        "conv1_w": jax.random.normal(ks[2], (C2, C, 1, 1), jnp.float32) / np.sqrt(C),
        "conv1_b": 0.1 * jax.random.normal(ks[3], (C2,), jnp.float32),
        "gn2_w": 1.0 + 0.5 * jax.random.normal(ks[4], (C2,), jnp.float32),
        "gn2_b": 0.1 * jax.random.normal(ks[5], (C2,), jnp.float32),
        "conv2_w": jax.random.normal(ks[6], (Cout, C2, 3, 3), jnp.float32) / np.sqrt(9 * C2),
        "conv2_b": 0.1 * jax.random.normal(ks[7], (Cout,), jnp.float32),
    }
    x = jax.random.normal(ks[8], (N, C, H, W), jnp.float32)

    fwd = jax.jit(lambda xx: conv_block_forward(xx, params, num_groups))
    out = jax.block_until_ready(fwd(x))

    ref = _reference(x, params, num_groups)
    # bf16 input / bf16 MXU operands (f32 accumulation) vs a pure-f32 reference.
    np.testing.assert_allclose(np.asarray(out), np.asarray(ref), rtol=2e-2, atol=2e-2)
    print("KERNEL_OK")
</pallas_src>

<mosaic_0001>
module attributes {stable_mosaic.version = 11 : i64} {
  func.func @_conv_block_kernel(%arg0: i32, %arg1: memref<1x8x256xbf16, #tpu.memory_space<vmem>>, %arg2: memref<8x4xf32, #tpu.memory_space<vmem>>, %arg3: memref<8x1xf32, #tpu.memory_space<vmem>>, %arg4: memref<8x1xf32, #tpu.memory_space<vmem>>, %arg5: memref<32x8xbf16, #tpu.memory_space<vmem>>, %arg6: memref<32x1xf32, #tpu.memory_space<vmem>>, %arg7: memref<32x4xf32, #tpu.memory_space<vmem>>, %arg8: memref<32x1xf32, #tpu.memory_space<vmem>>, %arg9: memref<32x1xf32, #tpu.memory_space<vmem>>, %arg10: memref<9x8x32xbf16, #tpu.memory_space<vmem>>, %arg11: memref<8x1xf32, #tpu.memory_space<vmem>>, %arg12: memref<1x8x256xf32, #tpu.memory_space<vmem>>) attributes {dimension_semantics = [#tpu.dimension_semantics<parallel>], iteration_bounds = array<i64: 2>, scalar_prefetch = 0 : i64, scratch_operands = 0 : i64, tpu.core_type = #tpu.core_type<tc>, window_params = [{transform_indices = @transform_0, window_bounds = array<i64: 1, 8, 256>}, {pipeline_mode = #tpu.pipeline_mode<synchronous>, transform_indices = @transform_1, window_bounds = array<i64: 8, 4>}, {pipeline_mode = #tpu.pipeline_mode<synchronous>, transform_indices = @transform_2, window_bounds = array<i64: 8, 1>}, {pipeline_mode = #tpu.pipeline_mode<synchronous>, transform_indices = @transform_3, window_bounds = array<i64: 8, 1>}, {pipeline_mode = #tpu.pipeline_mode<synchronous>, transform_indices = @transform_4, window_bounds = array<i64: 32, 8>}, {pipeline_mode = #tpu.pipeline_mode<synchronous>, transform_indices = @transform_5, window_bounds = array<i64: 32, 1>}, {pipeline_mode = #tpu.pipeline_mode<synchronous>, transform_indices = @transform_6, window_bounds = array<i64: 32, 4>}, {pipeline_mode = #tpu.pipeline_mode<synchronous>, transform_indices = @transform_7, window_bounds = array<i64: 32, 1>}, {pipeline_mode = #tpu.pipeline_mode<synchronous>, transform_indices = @transform_8, window_bounds = array<i64: 32, 1>}, {pipeline_mode = #tpu.pipeline_mode<synchronous>, transform_indices = @transform_9, window_bounds = array<i64: 9, 8, 32>}, {pipeline_mode = #tpu.pipeline_mode<synchronous>, transform_indices = @transform_10, window_bounds = array<i64: 8, 1>}, {transform_indices = @transform_11, window_bounds = array<i64: 1, 8, 256>}]} {
    %c0 = arith.constant 0 : index
    %c0_0 = arith.constant 0 : index
    %c0_1 = arith.constant 0 : index
    %0 = vector.load %arg1[%c0, %c0_0, %c0_1] : memref<1x8x256xbf16, #tpu.memory_space<vmem>>, vector<1x8x256xbf16>
    %1 = vector.shape_cast %0 : vector<1x8x256xbf16> to vector<8x256xbf16>
    %2 = arith.extf %1 : vector<8x256xbf16> to vector<8x256xf32>
    %c0_2 = arith.constant 0 : index
    %c0_3 = arith.constant 0 : index
    %3 = vector.load %arg2[%c0_2, %c0_3] : memref<8x4xf32, #tpu.memory_space<vmem>>, vector<8x4xf32>
    %cst = arith.constant dense<0.000000e+00> : vector<8xf32>
    %4 = vector.multi_reduction <add>, %2, %cst [1] : vector<8x256xf32> to vector<8xf32>
    %5 = vector.shape_cast %4 : vector<8xf32> to vector<8x1xf32>
    %6 = arith.mulf %2, %2 : vector<8x256xf32>
    %cst_4 = arith.constant dense<0.000000e+00> : vector<8xf32>
    %7 = vector.multi_reduction <add>, %6, %cst_4 [1] : vector<8x256xf32> to vector<8xf32>
    %8 = vector.shape_cast %7 : vector<8xf32> to vector<8x1xf32>
    %9 = vector.broadcast %5 : vector<8x1xf32> to vector<8x4xf32>
    %10 = arith.mulf %9, %3 : vector<8x4xf32>
    %cst_5 = arith.constant dense<0.000000e+00> : vector<4xf32>
    %11 = vector.multi_reduction <add>, %10, %cst_5 [0] : vector<8x4xf32> to vector<4xf32>
    %12 = vector.shape_cast %11 : vector<4xf32> to vector<1x4xf32>
    %13 = vector.broadcast %12 : vector<1x4xf32> to vector<8x4xf32>
    %14 = arith.mulf %3, %13 : vector<8x4xf32>
    %cst_6 = arith.constant dense<0.000000e+00> : vector<8xf32>
    %15 = vector.multi_reduction <add>, %14, %cst_6 [1] : vector<8x4xf32> to vector<8xf32>
    %16 = vector.shape_cast %15 : vector<8xf32> to vector<8x1xf32>
    %cst_7 = arith.constant 0.001953125 : f32
    %17 = vector.broadcast %cst_7 : f32 to vector<8x1xf32>
    %18 = arith.mulf %16, %17 : vector<8x1xf32>
    %19 = vector.broadcast %8 : vector<8x1xf32> to vector<8x4xf32>
    %20 = arith.mulf %19, %3 : vector<8x4xf32>
    %cst_8 = arith.constant dense<0.000000e+00> : vector<4xf32>
    %21 = vector.multi_reduction <add>, %20, %cst_8 [0] : vector<8x4xf32> to vector<4xf32>
    %22 = vector.shape_cast %21 : vector<4xf32> to vector<1x4xf32>
    %23 = vector.broadcast %22 : vector<1x4xf32> to vector<8x4xf32>
    %24 = arith.mulf %3, %23 : vector<8x4xf32>
    %cst_9 = arith.constant dense<0.000000e+00> : vector<8xf32>
    %25 = vector.multi_reduction <add>, %24, %cst_9 [1] : vector<8x4xf32> to vector<8xf32>
    %26 = vector.shape_cast %25 : vector<8xf32> to vector<8x1xf32>
    %cst_10 = arith.constant 0.001953125 : f32
    %27 = vector.broadcast %cst_10 : f32 to vector<8x1xf32>
    %28 = arith.mulf %26, %27 : vector<8x1xf32>
    %29 = arith.mulf %18, %18 : vector<8x1xf32>
    %30 = arith.subf %28, %29 : vector<8x1xf32>
    %cst_11 = arith.constant 0.000000e+00 : f32
    %31 = vector.broadcast %cst_11 : f32 to vector<8x1xf32>
    %32 = arith.maximumf %30, %31 : vector<8x1xf32>
    %c0_12 = arith.constant 0 : index
    %c0_13 = arith.constant 0 : index
    %33 = vector.load %arg3[%c0_12, %c0_13] : memref<8x1xf32, #tpu.memory_space<vmem>>, vector<8x1xf32>
    %cst_14 = arith.constant 9.99999974E-6 : f32
    %34 = vector.broadcast %cst_14 : f32 to vector<8x1xf32>
    %35 = arith.addf %32, %34 : vector<8x1xf32>
    %36 = math.rsqrt %35 : vector<8x1xf32>
    %37 = arith.mulf %33, %36 : vector<8x1xf32>
    %c0_15 = arith.constant 0 : index
    %c0_16 = arith.constant 0 : index
    %38 = vector.load %arg4[%c0_15, %c0_16] : memref<8x1xf32, #tpu.memory_space<vmem>>, vector<8x1xf32>
    %39 = arith.mulf %18, %37 : vector<8x1xf32>
    %40 = arith.subf %38, %39 : vector<8x1xf32>
    %41 = vector.broadcast %37 : vector<8x1xf32> to vector<8x256xf32>
    %42 = arith.mulf %2, %41 : vector<8x256xf32>
    %43 = vector.broadcast %40 : vector<8x1xf32> to vector<8x256xf32>
    %44 = arith.addf %42, %43 : vector<8x256xf32>
    %cst_17 = arith.constant 0.000000e+00 : f32
    %45 = vector.broadcast %cst_17 : f32 to vector<8x256xf32>
    %46 = arith.maximumf %44, %45 : vector<8x256xf32>
    %c0_18 = arith.constant 0 : index
    %c0_19 = arith.constant 0 : index
    %47 = vector.load %arg5[%c0_18, %c0_19] : memref<32x8xbf16, #tpu.memory_space<vmem>>, vector<32x8xbf16>
    %48 = arith.truncf %46 : vector<8x256xf32> to vector<8x256xbf16>
    %cst_20 = arith.constant dense<0.000000e+00> : vector<32x256xf32>
    %49 = tpu.matmul %47, %48, %cst_20 {dimension_numbers = #tpu.dot_dimension_numbers<[1], [0], [0], [1], [0, 0, 1, 1], [], []>} : vector<32x8xbf16>, vector<8x256xbf16>, vector<32x256xf32> -> vector<32x256xf32>
    %c0_21 = arith.constant 0 : index
    %c0_22 = arith.constant 0 : index
    %50 = vector.load %arg6[%c0_21, %c0_22] : memref<32x1xf32, #tpu.memory_space<vmem>>, vector<32x1xf32>
    %51 = vector.broadcast %50 : vector<32x1xf32> to vector<32x256xf32>
    %52 = arith.addf %49, %51 : vector<32x256xf32>
    %c0_23 = arith.constant 0 : index
    %c0_24 = arith.constant 0 : index
    %53 = vector.load %arg7[%c0_23, %c0_24] : memref<32x4xf32, #tpu.memory_space<vmem>>, vector<32x4xf32>
    %cst_25 = arith.constant dense<0.000000e+00> : vector<32xf32>
    %54 = vector.multi_reduction <add>, %52, %cst_25 [1] : vector<32x256xf32> to vector<32xf32>
    %55 = vector.shape_cast %54 : vector<32xf32> to vector<32x1xf32>
    %56 = arith.mulf %52, %52 : vector<32x256xf32>
    %cst_26 = arith.constant dense<0.000000e+00> : vector<32xf32>
    %57 = vector.multi_reduction <add>, %56, %cst_26 [1] : vector<32x256xf32> to vector<32xf32>
    %58 = vector.shape_cast %57 : vector<32xf32> to vector<32x1xf32>
    %59 = vector.broadcast %55 : vector<32x1xf32> to vector<32x4xf32>
    %60 = arith.mulf %59, %53 : vector<32x4xf32>
    %cst_27 = arith.constant dense<0.000000e+00> : vector<4xf32>
    %61 = vector.multi_reduction <add>, %60, %cst_27 [0] : vector<32x4xf32> to vector<4xf32>
    %62 = vector.shape_cast %61 : vector<4xf32> to vector<1x4xf32>
    %63 = vector.broadcast %62 : vector<1x4xf32> to vector<32x4xf32>
    %64 = arith.mulf %53, %63 : vector<32x4xf32>
    %cst_28 = arith.constant dense<0.000000e+00> : vector<32xf32>
    %65 = vector.multi_reduction <add>, %64, %cst_28 [1] : vector<32x4xf32> to vector<32xf32>
    %66 = vector.shape_cast %65 : vector<32xf32> to vector<32x1xf32>
    %cst_29 = arith.constant 4.8828125E-4 : f32
    %67 = vector.broadcast %cst_29 : f32 to vector<32x1xf32>
    %68 = arith.mulf %66, %67 : vector<32x1xf32>
    %69 = vector.broadcast %58 : vector<32x1xf32> to vector<32x4xf32>
    %70 = arith.mulf %69, %53 : vector<32x4xf32>
    %cst_30 = arith.constant dense<0.000000e+00> : vector<4xf32>
    %71 = vector.multi_reduction <add>, %70, %cst_30 [0] : vector<32x4xf32> to vector<4xf32>
    %72 = vector.shape_cast %71 : vector<4xf32> to vector<1x4xf32>
    %73 = vector.broadcast %72 : vector<1x4xf32> to vector<32x4xf32>
    %74 = arith.mulf %53, %73 : vector<32x4xf32>
    %cst_31 = arith.constant dense<0.000000e+00> : vector<32xf32>
    %75 = vector.multi_reduction <add>, %74, %cst_31 [1] : vector<32x4xf32> to vector<32xf32>
    %76 = vector.shape_cast %75 : vector<32xf32> to vector<32x1xf32>
    %cst_32 = arith.constant 4.8828125E-4 : f32
    %77 = vector.broadcast %cst_32 : f32 to vector<32x1xf32>
    %78 = arith.mulf %76, %77 : vector<32x1xf32>
    %79 = arith.mulf %68, %68 : vector<32x1xf32>
    %80 = arith.subf %78, %79 : vector<32x1xf32>
    %cst_33 = arith.constant 0.000000e+00 : f32
    %81 = vector.broadcast %cst_33 : f32 to vector<32x1xf32>
    %82 = arith.maximumf %80, %81 : vector<32x1xf32>
    %c0_34 = arith.constant 0 : index
    %c0_35 = arith.constant 0 : index
    %83 = vector.load %arg8[%c0_34, %c0_35] : memref<32x1xf32, #tpu.memory_space<vmem>>, vector<32x1xf32>
    %cst_36 = arith.constant 9.99999974E-6 : f32
    %84 = vector.broadcast %cst_36 : f32 to vector<32x1xf32>
    %85 = arith.addf %82, %84 : vector<32x1xf32>
    %86 = math.rsqrt %85 : vector<32x1xf32>
    %87 = arith.mulf %83, %86 : vector<32x1xf32>
    %c0_37 = arith.constant 0 : index
    %c0_38 = arith.constant 0 : index
    %88 = vector.load %arg9[%c0_37, %c0_38] : memref<32x1xf32, #tpu.memory_space<vmem>>, vector<32x1xf32>
    %89 = arith.mulf %68, %87 : vector<32x1xf32>
    %90 = arith.subf %88, %89 : vector<32x1xf32>
    %91 = vector.broadcast %87 : vector<32x1xf32> to vector<32x256xf32>
    %92 = arith.mulf %52, %91 : vector<32x256xf32>
    %93 = vector.broadcast %90 : vector<32x1xf32> to vector<32x256xf32>
    %94 = arith.addf %92, %93 : vector<32x256xf32>
    %cst_39 = arith.constant 0.000000e+00 : f32
    %95 = vector.broadcast %cst_39 : f32 to vector<32x256xf32>
    %96 = arith.maximumf %94, %95 : vector<32x256xf32>
    %97 = arith.truncf %96 : vector<32x256xf32> to vector<32x256xbf16>
    %98 = tpu.iota {dimensions = array<i32: 1>} : vector<1x256xi32>
    %99 = arith.sitofp %98 : vector<1x256xi32> to vector<1x256xf32>
    %cst_40 = arith.constant 5.000000e-01 : f32
    %100 = vector.broadcast %cst_40 : f32 to vector<1x256xf32>
    %101 = arith.addf %99, %100 : vector<1x256xf32>
    %cst_41 = arith.constant 6.250000e-02 : f32
    %102 = vector.broadcast %cst_41 : f32 to vector<1x256xf32>
    %103 = arith.mulf %101, %102 : vector<1x256xf32>
    %104 = math.floor %103 : vector<1x256xf32>
    %cst_42 = arith.constant 1.600000e+01 : f32
    %105 = vector.broadcast %cst_42 : f32 to vector<1x256xf32>
    %106 = arith.mulf %104, %105 : vector<1x256xf32>
    %107 = arith.subf %99, %106 : vector<1x256xf32>
    %c0_43 = arith.constant 0 : index
    %c0_44 = arith.constant 0 : index
    %c0_45 = arith.constant 0 : index
    %108 = vector.load %arg10[%c0_43, %c0_44, %c0_45] : memref<9x8x32xbf16, #tpu.memory_space<vmem>>, vector<1x8x32xbf16>
    %109 = vector.shape_cast %108 : vector<1x8x32xbf16> to vector<8x32xbf16>
    %cst_46 = arith.constant dense<0.000000e+00> : vector<8x256xf32>
    %110 = tpu.matmul %109, %97, %cst_46 {dimension_numbers = #tpu.dot_dimension_numbers<[1], [0], [0], [1], [0, 0, 1, 1], [], []>} : vector<8x32xbf16>, vector<32x256xbf16>, vector<8x256xf32> -> vector<8x256xf32>
    %c17_i32 = arith.constant 17 : i32
    %111 = tpu.dynamic_rotate %110 by %c17_i32 dim 1 : vector<8x256xf32>, i32 -> vector<8x256xf32>
    %cst_47 = arith.constant 1.000000e+00 : f32
    %112 = vector.broadcast %cst_47 : f32 to vector<1x256xf32>
    %113 = arith.cmpf oge, %104, %112 : vector<1x256xf32>
    %cst_48 = arith.constant 1.000000e+00 : f32
    %114 = vector.broadcast %cst_48 : f32 to vector<1x256xf32>
    %115 = arith.cmpf oge, %107, %114 : vector<1x256xf32>
    %116 = arith.andi %113, %115 : vector<1x256xi1>
    %cst_49 = arith.constant 0.000000e+00 : f32
    %117 = vector.shape_cast %116 : vector<1x256xi1> to vector<1x256xi1>
    %118 = vector.broadcast %117 : vector<1x256xi1> to vector<8x256xi1>
    %119 = vector.broadcast %cst_49 : f32 to vector<8x256xf32>
    %120 = arith.select %118, %111, %119 : vector<8x256xi1>, vector<8x256xf32>
    %c1 = arith.constant 1 : index
    %c0_50 = arith.constant 0 : index
    %c0_51 = arith.constant 0 : index
    %121 = vector.load %arg10[%c1, %c0_50, %c0_51] : memref<9x8x32xbf16, #tpu.memory_space<vmem>>, vector<1x8x32xbf16>
    %122 = vector.shape_cast %121 : vector<1x8x32xbf16> to vector<8x32xbf16>
    %cst_52 = arith.constant dense<0.000000e+00> : vector<8x256xf32>
    %123 = tpu.matmul %122, %97, %cst_52 {dimension_numbers = #tpu.dot_dimension_numbers<[1], [0], [0], [1], [0, 0, 1, 1], [], []>} : vector<8x32xbf16>, vector<32x256xbf16>, vector<8x256xf32> -> vector<8x256xf32>
    %c16_i32 = arith.constant 16 : i32
    %124 = tpu.dynamic_rotate %123 by %c16_i32 dim 1 : vector<8x256xf32>, i32 -> vector<8x256xf32>
    %cst_53 = arith.constant 1.000000e+00 : f32
    %125 = vector.broadcast %cst_53 : f32 to vector<1x256xf32>
    %126 = arith.cmpf oge, %104, %125 : vector<1x256xf32>
    %cst_54 = arith.constant 0.000000e+00 : f32
    %127 = vector.shape_cast %126 : vector<1x256xi1> to vector<1x256xi1>
    %128 = vector.broadcast %127 : vector<1x256xi1> to vector<8x256xi1>
    %129 = vector.broadcast %cst_54 : f32 to vector<8x256xf32>
    %130 = arith.select %128, %124, %129 : vector<8x256xi1>, vector<8x256xf32>
    %131 = arith.addf %120, %130 : vector<8x256xf32>
    %c2 = arith.constant 2 : index
    %c0_55 = arith.constant 0 : index
    %c0_56 = arith.constant 0 : index
    %132 = vector.load %arg10[%c2, %c0_55, %c0_56] : memref<9x8x32xbf16, #tpu.memory_space<vmem>>, vector<1x8x32xbf16>
    %133 = vector.shape_cast %132 : vector<1x8x32xbf16> to vector<8x32xbf16>
    %cst_57 = arith.constant dense<0.000000e+00> : vector<8x256xf32>
    %134 = tpu.matmul %133, %97, %cst_57 {dimension_numbers = #tpu.dot_dimension_numbers<[1], [0], [0], [1], [0, 0, 1, 1], [], []>} : vector<8x32xbf16>, vector<32x256xbf16>, vector<8x256xf32> -> vector<8x256xf32>
    %c15_i32 = arith.constant 15 : i32
    %135 = tpu.dynamic_rotate %134 by %c15_i32 dim 1 : vector<8x256xf32>, i32 -> vector<8x256xf32>
    %cst_58 = arith.constant 1.000000e+00 : f32
    %136 = vector.broadcast %cst_58 : f32 to vector<1x256xf32>
    %137 = arith.cmpf oge, %104, %136 : vector<1x256xf32>
    %cst_59 = arith.constant 1.500000e+01 : f32
    %138 = vector.broadcast %cst_59 : f32 to vector<1x256xf32>
    %139 = arith.cmpf olt, %107, %138 : vector<1x256xf32>
    %140 = arith.andi %137, %139 : vector<1x256xi1>
    %cst_60 = arith.constant 0.000000e+00 : f32
    %141 = vector.shape_cast %140 : vector<1x256xi1> to vector<1x256xi1>
    %142 = vector.broadcast %141 : vector<1x256xi1> to vector<8x256xi1>
    %143 = vector.broadcast %cst_60 : f32 to vector<8x256xf32>
    %144 = arith.select %142, %135, %143 : vector<8x256xi1>, vector<8x256xf32>
    %145 = arith.addf %131, %144 : vector<8x256xf32>
    %c3 = arith.constant 3 : index
    %c0_61 = arith.constant 0 : index
    %c0_62 = arith.constant 0 : index
    %146 = vector.load %arg10[%c3, %c0_61, %c0_62] : memref<9x8x32xbf16, #tpu.memory_space<vmem>>, vector<1x8x32xbf16>
    %147 = vector.shape_cast %146 : vector<1x8x32xbf16> to vector<8x32xbf16>
    %cst_63 = arith.constant dense<0.000000e+00> : vector<8x256xf32>
    %148 = tpu.matmul %147, %97, %cst_63 {dimension_numbers = #tpu.dot_dimension_numbers<[1], [0], [0], [1], [0, 0, 1, 1], [], []>} : vector<8x32xbf16>, vector<32x256xbf16>, vector<8x256xf32> -> vector<8x256xf32>
    %c1_i32 = arith.constant 1 : i32
    %149 = tpu.dynamic_rotate %148 by %c1_i32 dim 1 : vector<8x256xf32>, i32 -> vector<8x256xf32>
    %cst_64 = arith.constant 1.000000e+00 : f32
    %150 = vector.broadcast %cst_64 : f32 to vector<1x256xf32>
    %151 = arith.cmpf oge, %107, %150 : vector<1x256xf32>
    %cst_65 = arith.constant 0.000000e+00 : f32
    %152 = vector.shape_cast %151 : vector<1x256xi1> to vector<1x256xi1>
    %153 = vector.broadcast %152 : vector<1x256xi1> to vector<8x256xi1>
    %154 = vector.broadcast %cst_65 : f32 to vector<8x256xf32>
    %155 = arith.select %153, %149, %154 : vector<8x256xi1>, vector<8x256xf32>
    %156 = arith.addf %145, %155 : vector<8x256xf32>
    %c4 = arith.constant 4 : index
    %c0_66 = arith.constant 0 : index
    %c0_67 = arith.constant 0 : index
    %157 = vector.load %arg10[%c4, %c0_66, %c0_67] : memref<9x8x32xbf16, #tpu.memory_space<vmem>>, vector<1x8x32xbf16>
    %158 = vector.shape_cast %157 : vector<1x8x32xbf16> to vector<8x32xbf16>
    %cst_68 = arith.constant dense<0.000000e+00> : vector<8x256xf32>
    %159 = tpu.matmul %158, %97, %cst_68 {dimension_numbers = #tpu.dot_dimension_numbers<[1], [0], [0], [1], [0, 0, 1, 1], [], []>} : vector<8x32xbf16>, vector<32x256xbf16>, vector<8x256xf32> -> vector<8x256xf32>
    %160 = arith.addf %156, %159 : vector<8x256xf32>
    %c5 = arith.constant 5 : index
    %c0_69 = arith.constant 0 : index
    %c0_70 = arith.constant 0 : index
    %161 = vector.load %arg10[%c5, %c0_69, %c0_70] : memref<9x8x32xbf16, #tpu.memory_space<vmem>>, vector<1x8x32xbf16>
    %162 = vector.shape_cast %161 : vector<1x8x32xbf16> to vector<8x32xbf16>
    %cst_71 = arith.constant dense<0.000000e+00> : vector<8x256xf32>
    %163 = tpu.matmul %162, %97, %cst_71 {dimension_numbers = #tpu.dot_dimension_numbers<[1], [0], [0], [1], [0, 0, 1, 1], [], []>} : vector<8x32xbf16>, vector<32x256xbf16>, vector<8x256xf32> -> vector<8x256xf32>
    %c255_i32 = arith.constant 255 : i32
    %164 = tpu.dynamic_rotate %163 by %c255_i32 dim 1 : vector<8x256xf32>, i32 -> vector<8x256xf32>
    %cst_72 = arith.constant 1.500000e+01 : f32
    %165 = vector.broadcast %cst_72 : f32 to vector<1x256xf32>
    %166 = arith.cmpf olt, %107, %165 : vector<1x256xf32>
    %cst_73 = arith.constant 0.000000e+00 : f32
    %167 = vector.shape_cast %166 : vector<1x256xi1> to vector<1x256xi1>
    %168 = vector.broadcast %167 : vector<1x256xi1> to vector<8x256xi1>
    %169 = vector.broadcast %cst_73 : f32 to vector<8x256xf32>
    %170 = arith.select %168, %164, %169 : vector<8x256xi1>, vector<8x256xf32>
    %171 = arith.addf %160, %170 : vector<8x256xf32>
    %c6 = arith.constant 6 : index
    %c0_74 = arith.constant 0 : index
    %c0_75 = arith.constant 0 : index
    %172 = vector.load %arg10[%c6, %c0_74, %c0_75] : memref<9x8x32xbf16, #tpu.memory_space<vmem>>, vector<1x8x32xbf16>
    %173 = vector.shape_cast %172 : vector<1x8x32xbf16> to vector<8x32xbf16>
    %cst_76 = arith.constant dense<0.000000e+00> : vector<8x256xf32>
    %174 = tpu.matmul %173, %97, %cst_76 {dimension_numbers = #tpu.dot_dimension_numbers<[1], [0], [0], [1], [0, 0, 1, 1], [], []>} : vector<8x32xbf16>, vector<32x256xbf16>, vector<8x256xf32> -> vector<8x256xf32>
    %c241_i32 = arith.constant 241 : i32
    %175 = tpu.dynamic_rotate %174 by %c241_i32 dim 1 : vector<8x256xf32>, i32 -> vector<8x256xf32>
    %cst_77 = arith.constant 1.500000e+01 : f32
    %176 = vector.broadcast %cst_77 : f32 to vector<1x256xf32>
    %177 = arith.cmpf olt, %104, %176 : vector<1x256xf32>
    %cst_78 = arith.constant 1.000000e+00 : f32
    %178 = vector.broadcast %cst_78 : f32 to vector<1x256xf32>
    %179 = arith.cmpf oge, %107, %178 : vector<1x256xf32>
    %180 = arith.andi %177, %179 : vector<1x256xi1>
    %cst_79 = arith.constant 0.000000e+00 : f32
    %181 = vector.shape_cast %180 : vector<1x256xi1> to vector<1x256xi1>
    %182 = vector.broadcast %181 : vector<1x256xi1> to vector<8x256xi1>
    %183 = vector.broadcast %cst_79 : f32 to vector<8x256xf32>
    %184 = arith.select %182, %175, %183 : vector<8x256xi1>, vector<8x256xf32>
    %185 = arith.addf %171, %184 : vector<8x256xf32>
    %c7 = arith.constant 7 : index
    %c0_80 = arith.constant 0 : index
    %c0_81 = arith.constant 0 : index
    %186 = vector.load %arg10[%c7, %c0_80, %c0_81] : memref<9x8x32xbf16, #tpu.memory_space<vmem>>, vector<1x8x32xbf16>
    %187 = vector.shape_cast %186 : vector<1x8x32xbf16> to vector<8x32xbf16>
    %cst_82 = arith.constant dense<0.000000e+00> : vector<8x256xf32>
    %188 = tpu.matmul %187, %97, %cst_82 {dimension_numbers = #tpu.dot_dimension_numbers<[1], [0], [0], [1], [0, 0, 1, 1], [], []>} : vector<8x32xbf16>, vector<32x256xbf16>, vector<8x256xf32> -> vector<8x256xf32>
    %c240_i32 = arith.constant 240 : i32
    %189 = tpu.dynamic_rotate %188 by %c240_i32 dim 1 : vector<8x256xf32>, i32 -> vector<8x256xf32>
    %cst_83 = arith.constant 1.500000e+01 : f32
    %190 = vector.broadcast %cst_83 : f32 to vector<1x256xf32>
    %191 = arith.cmpf olt, %104, %190 : vector<1x256xf32>
    %cst_84 = arith.constant 0.000000e+00 : f32
    %192 = vector.shape_cast %191 : vector<1x256xi1> to vector<1x256xi1>
    %193 = vector.broadcast %192 : vector<1x256xi1> to vector<8x256xi1>
    %194 = vector.broadcast %cst_84 : f32 to vector<8x256xf32>
    %195 = arith.select %193, %189, %194 : vector<8x256xi1>, vector<8x256xf32>
    %196 = arith.addf %185, %195 : vector<8x256xf32>
    %c8 = arith.constant 8 : index
    %c0_85 = arith.constant 0 : index
    %c0_86 = arith.constant 0 : index
    %197 = vector.load %arg10[%c8, %c0_85, %c0_86] : memref<9x8x32xbf16, #tpu.memory_space<vmem>>, vector<1x8x32xbf16>
    %198 = vector.shape_cast %197 : vector<1x8x32xbf16> to vector<8x32xbf16>
    %cst_87 = arith.constant dense<0.000000e+00> : vector<8x256xf32>
    %199 = tpu.matmul %198, %97, %cst_87 {dimension_numbers = #tpu.dot_dimension_numbers<[1], [0], [0], [1], [0, 0, 1, 1], [], []>} : vector<8x32xbf16>, vector<32x256xbf16>, vector<8x256xf32> -> vector<8x256xf32>
    %c239_i32 = arith.constant 239 : i32
    %200 = tpu.dynamic_rotate %199 by %c239_i32 dim 1 : vector<8x256xf32>, i32 -> vector<8x256xf32>
    %cst_88 = arith.constant 1.500000e+01 : f32
    %201 = vector.broadcast %cst_88 : f32 to vector<1x256xf32>
    %202 = arith.cmpf olt, %104, %201 : vector<1x256xf32>
    %cst_89 = arith.constant 1.500000e+01 : f32
    %203 = vector.broadcast %cst_89 : f32 to vector<1x256xf32>
    %204 = arith.cmpf olt, %107, %203 : vector<1x256xf32>
    %205 = arith.andi %202, %204 : vector<1x256xi1>
    %cst_90 = arith.constant 0.000000e+00 : f32
    %206 = vector.shape_cast %205 : vector<1x256xi1> to vector<1x256xi1>
    %207 = vector.broadcast %206 : vector<1x256xi1> to vector<8x256xi1>
    %208 = vector.broadcast %cst_90 : f32 to vector<8x256xf32>
    %209 = arith.select %207, %200, %208 : vector<8x256xi1>, vector<8x256xf32>
    %210 = arith.addf %196, %209 : vector<8x256xf32>
    %c0_91 = arith.constant 0 : index
    %c0_92 = arith.constant 0 : index
    %211 = vector.load %arg11[%c0_91, %c0_92] : memref<8x1xf32, #tpu.memory_space<vmem>>, vector<8x1xf32>
    %212 = vector.broadcast %211 : vector<8x1xf32> to vector<8x256xf32>
    %213 = arith.addf %210, %212 : vector<8x256xf32>
    %c0_93 = arith.constant 0 : index
    %c0_94 = arith.constant 0 : index
    %c0_95 = arith.constant 0 : index
    %214 = vector.load %arg12[%c0_93, %c0_94, %c0_95] : memref<1x8x256xf32, #tpu.memory_space<vmem>>, vector<1x8x256xf32>
    %215 = vector.shape_cast %214 : vector<1x8x256xf32> to vector<8x256xf32>
    %216 = vector.shape_cast %213 : vector<8x256xf32> to vector<1x8x256xf32>
    tpu.vector_store %arg12[%c0_93, %c0_94, %c0_95], %216 {strides = array<i32>} : memref<1x8x256xf32, #tpu.memory_space<vmem>>, vector<1x8x256xf32>,
    return
  }
  func.func @transform_0(%arg0: i32) -> (i32, i32, i32) {
    %c0_i32 = arith.constant 0 : i32
    %c0_i32_0 = arith.constant 0 : i32
    %c0_i32_1 = arith.constant 0 : i32
    return %arg0, %c0_i32, %c0_i32_0 : i32, i32, i32
  }
  func.func @transform_1(%arg0: i32) -> (i32, i32) {
    %c0_i32 = arith.constant 0 : i32
    %c0_i32_0 = arith.constant 0 : i32
    %c0_i32_1 = arith.constant 0 : i32
    return %c0_i32, %c0_i32_0 : i32, i32
  }
  func.func @transform_2(%arg0: i32) -> (i32, i32) {
    %c0_i32 = arith.constant 0 : i32
    %c0_i32_0 = arith.constant 0 : i32
    %c0_i32_1 = arith.constant 0 : i32
    return %c0_i32, %c0_i32_0 : i32, i32
  }
  func.func @transform_3(%arg0: i32) -> (i32, i32) {
    %c0_i32 = arith.constant 0 : i32
    %c0_i32_0 = arith.constant 0 : i32
    %c0_i32_1 = arith.constant 0 : i32
    return %c0_i32, %c0_i32_0 : i32, i32
  }
  func.func @transform_4(%arg0: i32) -> (i32, i32) {
    %c0_i32 = arith.constant 0 : i32
    %c0_i32_0 = arith.constant 0 : i32
    %c0_i32_1 = arith.constant 0 : i32
    return %c0_i32, %c0_i32_0 : i32, i32
  }
  func.func @transform_5(%arg0: i32) -> (i32, i32) {
    %c0_i32 = arith.constant 0 : i32
    %c0_i32_0 = arith.constant 0 : i32
    %c0_i32_1 = arith.constant 0 : i32
    return %c0_i32, %c0_i32_0 : i32, i32
  }
  func.func @transform_6(%arg0: i32) -> (i32, i32) {
    %c0_i32 = arith.constant 0 : i32
    %c0_i32_0 = arith.constant 0 : i32
    %c0_i32_1 = arith.constant 0 : i32
    return %c0_i32, %c0_i32_0 : i32, i32
  }
  func.func @transform_7(%arg0: i32) -> (i32, i32) {
    %c0_i32 = arith.constant 0 : i32
    %c0_i32_0 = arith.constant 0 : i32
    %c0_i32_1 = arith.constant 0 : i32
    return %c0_i32, %c0_i32_0 : i32, i32
  }
  func.func @transform_8(%arg0: i32) -> (i32, i32) {
    %c0_i32 = arith.constant 0 : i32
    %c0_i32_0 = arith.constant 0 : i32
    %c0_i32_1 = arith.constant 0 : i32
    return %c0_i32, %c0_i32_0 : i32, i32
  }
  func.func @transform_9(%arg0: i32) -> (i32, i32, i32) {
    %c0_i32 = arith.constant 0 : i32
    %c0_i32_0 = arith.constant 0 : i32
    %c0_i32_1 = arith.constant 0 : i32
    %c0_i32_2 = arith.constant 0 : i32
    return %c0_i32, %c0_i32_0, %c0_i32_1 : i32, i32, i32
  }
  func.func @transform_10(%arg0: i32) -> (i32, i32) {
    %c0_i32 = arith.constant 0 : i32
    %c0_i32_0 = arith.constant 0 : i32
    %c0_i32_1 = arith.constant 0 : i32
    return %c0_i32, %c0_i32_0 : i32, i32
  }
  func.func @transform_11(%arg0: i32) -> (i32, i32, i32) {
    %c0_i32 = arith.constant 0 : i32
    %c0_i32_0 = arith.constant 0 : i32
    %c0_i32_1 = arith.constant 0 : i32
    return %arg0, %c0_i32, %c0_i32_0 : i32, i32, i32
  }
}

</mosaic_0001>

<llo_original>
// kernel: _lambda_.1
$region0: #{_lambda_.1}
  #allocation0 [shape = 'u32[]', space=smem, size = 0x4, offset = 0x4, fixed_abs, tag = 'smem constant byte address 0x4 - core index']
  #allocation1 [shape = 'u32[144,128]{1,0:T(1,128)}', space=vmem, size = 0x12000, scoped, tag = 'internal scratch']
  %s0 = inlined_call_operand.vmem [shape: bf16[2,8,256], index: 0, kind: input, shape index: {}]
  %s1 = inlined_call_operand.vmem [shape: f32[8,4], index: 1, kind: input, shape index: {}]
  %s2 = inlined_call_operand.vmem [shape: f32[8,1], index: 2, kind: input, shape index: {}]
  %s3 = inlined_call_operand.vmem [shape: f32[8,1], index: 3, kind: input, shape index: {}]
  %s4 = inlined_call_operand.vmem [shape: bf16[32,8], index: 4, kind: input, shape index: {}]
  %s5 = inlined_call_operand.vmem [shape: f32[32,1], index: 5, kind: input, shape index: {}]
  %s6 = inlined_call_operand.vmem [shape: f32[32,4], index: 6, kind: input, shape index: {}]
  %s7 = inlined_call_operand.vmem [shape: f32[32,1], index: 7, kind: input, shape index: {}]
  %s8 = inlined_call_operand.vmem [shape: f32[32,1], index: 8, kind: input, shape index: {}]
  %s9 = inlined_call_operand.vmem [shape: bf16[9,8,32], index: 9, kind: input, shape index: {}]
  %s10 = inlined_call_operand.vmem [shape: f32[8,1], index: 10, kind: input, shape index: {}]
  %s11 = inlined_call_operand.vmem [shape: f32[2,8,256], index: 11, kind: output, shape index: {}]
  %s12 = sld [smem:[#allocation0]]
  $region77: #{_lambda_.1} parent=0
    _
  %s14 = ssub.s32 1, %s12
  %s15 = scalar_select 0, %s14, %s12
  loop: start=0, step=1, limit=4
  $region2: #{_lambda_.1} parent=0 // loop_pre_header
    _
  $region3: #{_lambda_.1} parent=0 // loop_header
    %s17 = sphi 0, %s21
    %p18 = scmp.ge.s32.totalorder %s17, 4
    %s27 = sphi 0, %s29
    %s30 = sphi 0, %s27
    %s31 = sphi 0, %s30
    %s47 = sphi 0, %s31
    %s51 = sphi 0, %s51
    %s53 = sphi 0, %s51
    %s54 = sphi 0, %s53
    %s68 = sphi 0, %s54
    %s72 = sphi 0, %s72
    %s74 = sphi 0, %s72
    %s75 = sphi 0, %s74
    %s89 = sphi 0, %s75
    %s93 = sphi 0, %s93
    %s95 = sphi 0, %s93
    %s96 = sphi 0, %s95
    %s110 = sphi 0, %s96
    %s114 = sphi 0, %s114
    %s116 = sphi 0, %s114
    %s117 = sphi 0, %s116
    %s131 = sphi 0, %s117
    %s135 = sphi 0, %s135
    %s137 = sphi 0, %s135
    %s138 = sphi 0, %s137
    %s152 = sphi 0, %s138
    %s156 = sphi 0, %s156
    %s158 = sphi 0, %s156
    %s159 = sphi 0, %s158
    %s173 = sphi 0, %s159
    %s177 = sphi 0, %s177
    %s179 = sphi 0, %s177
    %s180 = sphi 0, %s179
    %s194 = sphi 0, %s180
    %s198 = sphi 0, %s198
    %s200 = sphi 0, %s198
    %s201 = sphi 0, %s200
    %s215 = sphi 0, %s201
    %s219 = sphi 0, %s219
    %s221 = sphi 0, %s219
    %s222 = sphi 0, %s221
    %s236 = sphi 0, %s222
    %s240 = sphi 0, %s240
    %s242 = sphi 0, %s240
    %s243 = sphi 0, %s242
    %s257 = sphi 0, %s243
    %s263 = sphi 0, %s265
    %s266 = sphi 0, %s263
    %s267 = sphi 0, %s266
    %s283 = sphi 0, %s267
  $region4: #{_lambda_.1} parent=0 // loop_header_branch
    %20 = sbr.rel (%p18) target = $region8
  $region5: #{_lambda_.1} parent=0 // loop_body
    %s22 = ssub.s32 %s17, 1
    %s23 = ssub.s32 %s17, 2
    %s24 = sadd.s32 %s17, 1
    %s25 = ssub.s32 %s17, %s24
    %p26 = scmp.eq.s32.totalorder %s25, 0
    %s28 = sadd.s32 %s27, 1
    %s29 = scalar_select %p26, %s27, %s28
    %p32 = pneg %p26
    %p33 = scmp.eq.s32.totalorder %s17, 1
    %p34 = por %p32, %p33
    %p35 = scmp.ne.s32.totalorder %s27, %s30
    %p36 = scmp.eq.s32.totalorder %s17, 0
    %p37 = por %p35, %p36
    %p38 = scmp.ne.s32.totalorder %s27, %s30
    %p39 = scmp.eq.s32.totalorder %s22, 1
    %p40 = por %p38, %p39
    %p41 = scmp.ne.s32.totalorder %s30, %s31
    %p42 = scmp.eq.s32.totalorder %s22, 0
    %p43 = por %p41, %p42
    %p44 = scmp.ne.s32.totalorder %s30, %s31
    %p45 = scmp.eq.s32.totalorder %s23, 1
    %p46 = por %p44, %p45
    %p48 = scmp.ne.s32.totalorder %s31, %s47
    %p49 = scmp.eq.s32.totalorder %s23, 0
    %p50 = por %p48, %p49
    %s52 = sadd.s32 %s51, 1
    %p55 = scmp.eq.s32.totalorder %s17, 1
    %p56 = scmp.ne.s32.totalorder %s51, %s53
    %p57 = scmp.eq.s32.totalorder %s17, 0
    %p58 = por %p56, %p57
    %p59 = scmp.ne.s32.totalorder %s51, %s53
    %p60 = scmp.eq.s32.totalorder %s22, 1
    %p61 = por %p59, %p60
    %p62 = scmp.ne.s32.totalorder %s53, %s54
    %p63 = scmp.eq.s32.totalorder %s22, 0
    %p64 = por %p62, %p63
    %p65 = scmp.ne.s32.totalorder %s53, %s54
    %p66 = scmp.eq.s32.totalorder %s23, 1
    %p67 = por %p65, %p66
    %p69 = scmp.ne.s32.totalorder %s54, %s68
    %p70 = scmp.eq.s32.totalorder %s23, 0
    %p71 = por %p69, %p70
    %s73 = sadd.s32 %s72, 1
    %p76 = scmp.eq.s32.totalorder %s17, 1
    %p77 = scmp.ne.s32.totalorder %s72, %s74
    %p78 = scmp.eq.s32.totalorder %s17, 0
    %p79 = por %p77, %p78
    %p80 = scmp.ne.s32.totalorder %s72, %s74
    %p81 = scmp.eq.s32.totalorder %s22, 1
    %p82 = por %p80, %p81
    %p83 = scmp.ne.s32.totalorder %s74, %s75
    %p84 = scmp.eq.s32.totalorder %s22, 0
    %p85 = por %p83, %p84
    %p86 = scmp.ne.s32.totalorder %s74, %s75
    %p87 = scmp.eq.s32.totalorder %s23, 1
    %p88 = por %p86, %p87
    %p90 = scmp.ne.s32.totalorder %s75, %s89
    %p91 = scmp.eq.s32.totalorder %s23, 0
    %p92 = por %p90, %p91
    %s94 = sadd.s32 %s93, 1
    %p97 = scmp.eq.s32.totalorder %s17, 1
    %p98 = scmp.ne.s32.totalorder %s93, %s95
    %p99 = scmp.eq.s32.totalorder %s17, 0
    %p100 = por %p98, %p99
    %p101 = scmp.ne.s32.totalorder %s93, %s95
    %p102 = scmp.eq.s32.totalorder %s22, 1
    %p103 = por %p101, %p102
    %p104 = scmp.ne.s32.totalorder %s95, %s96
    %p105 = scmp.eq.s32.totalorder %s22, 0
    %p106 = por %p104, %p105
    %p107 = scmp.ne.s32.totalorder %s95, %s96
    %p108 = scmp.eq.s32.totalorder %s23, 1
    %p109 = por %p107, %p108
    %p111 = scmp.ne.s32.totalorder %s96, %s110
    %p112 = scmp.eq.s32.totalorder %s23, 0
    %p113 = por %p111, %p112
    %s115 = sadd.s32 %s114, 1
    %p118 = scmp.eq.s32.totalorder %s17, 1
    %p119 = scmp.ne.s32.totalorder %s114, %s116
    %p120 = scmp.eq.s32.totalorder %s17, 0
    %p121 = por %p119, %p120
    %p122 = scmp.ne.s32.totalorder %s114, %s116
    %p123 = scmp.eq.s32.totalorder %s22, 1
    %p124 = por %p122, %p123
    %p125 = scmp.ne.s32.totalorder %s116, %s117
    %p126 = scmp.eq.s32.totalorder %s22, 0
    %p127 = por %p125, %p126
    %p128 = scmp.ne.s32.totalorder %s116, %s117
    %p129 = scmp.eq.s32.totalorder %s23, 1
    %p130 = por %p128, %p129
    %p132 = scmp.ne.s32.totalorder %s117, %s131
    %p133 = scmp.eq.s32.totalorder %s23, 0
    %p134 = por %p132, %p133
    %s136 = sadd.s32 %s135, 1
    %p139 = scmp.eq.s32.totalorder %s17, 1
    %p140 = scmp.ne.s32.totalorder %s135, %s137
    %p141 = scmp.eq.s32.totalorder %s17, 0
    %p142 = por %p140, %p141
    %p143 = scmp.ne.s32.totalorder %s135, %s137
    %p144 = scmp.eq.s32.totalorder %s22, 1
    %p145 = por %p143, %p144
    %p146 = scmp.ne.s32.totalorder %s137, %s138
    %p147 = scmp.eq.s32.totalorder %s22, 0
    %p148 = por %p146, %p147
    %p149 = scmp.ne.s32.totalorder %s137, %s138
    %p150 = scmp.eq.s32.totalorder %s23, 1
    %p151 = por %p149, %p150
    %p153 = scmp.ne.s32.totalorder %s138, %s152
    %p154 = scmp.eq.s32.totalorder %s23, 0
    %p155 = por %p153, %p154
    %s157 = sadd.s32 %s156, 1
    %p160 = scmp.eq.s32.totalorder %s17, 1
    %p161 = scmp.ne.s32.totalorder %s156, %s158
    %p162 = scmp.eq.s32.totalorder %s17, 0
    %p163 = por %p161, %p162
    %p164 = scmp.ne.s32.totalorder %s156, %s158
    %p165 = scmp.eq.s32.totalorder %s22, 1
    %p166 = por %p164, %p165
    %p167 = scmp.ne.s32.totalorder %s158, %s159
    %p168 = scmp.eq.s32.totalorder %s22, 0
    %p169 = por %p167, %p168
    %p170 = scmp.ne.s32.totalorder %s158, %s159
    %p171 = scmp.eq.s32.totalorder %s23, 1
    %p172 = por %p170, %p171
    %p174 = scmp.ne.s32.totalorder %s159, %s173
    %p175 = scmp.eq.s32.totalorder %s23, 0
    %p176 = por %p174, %p175
    %s178 = sadd.s32 %s177, 1
    %p181 = scmp.eq.s32.totalorder %s17, 1
    %p182 = scmp.ne.s32.totalorder %s177, %s179
    %p183 = scmp.eq.s32.totalorder %s17, 0
    %p184 = por %p182, %p183
    %p185 = scmp.ne.s32.totalorder %s177, %s179
    %p186 = scmp.eq.s32.totalorder %s22, 1
    %p187 = por %p185, %p186
    %p188 = scmp.ne.s32.totalorder %s179, %s180
    %p189 = scmp.eq.s32.totalorder %s22, 0
    %p190 = por %p188, %p189
    %p191 = scmp.ne.s32.totalorder %s179, %s180
    %p192 = scmp.eq.s32.totalorder %s23, 1
    %p193 = por %p191, %p192
    %p195 = scmp.ne.s32.totalorder %s180, %s194
    %p196 = scmp.eq.s32.totalorder %s23, 0
    %p197 = por %p195, %p196
    %s199 = sadd.s32 %s198, 1
    %p202 = scmp.eq.s32.totalorder %s17, 1
    %p203 = scmp.ne.s32.totalorder %s198, %s200
    %p204 = scmp.eq.s32.totalorder %s17, 0
    %p205 = por %p203, %p204
    %p206 = scmp.ne.s32.totalorder %s198, %s200
    %p207 = scmp.eq.s32.totalorder %s22, 1
    %p208 = por %p206, %p207
    %p209 = scmp.ne.s32.totalorder %s200, %s201
    %p210 = scmp.eq.s32.totalorder %s22, 0
    %p211 = por %p209, %p210
    %p212 = scmp.ne.s32.totalorder %s200, %s201
    %p213 = scmp.eq.s32.totalorder %s23, 1
    %p214 = por %p212, %p213
    %p216 = scmp.ne.s32.totalorder %s201, %s215
    %p217 = scmp.eq.s32.totalorder %s23, 0
    %p218 = por %p216, %p217
    %s220 = sadd.s32 %s219, 1
    %p223 = scmp.eq.s32.totalorder %s17, 1
    %p224 = scmp.ne.s32.totalorder %s219, %s221
    %p225 = scmp.eq.s32.totalorder %s17, 0
    %p226 = por %p224, %p225
    %p227 = scmp.ne.s32.totalorder %s219, %s221
    %p228 = scmp.eq.s32.totalorder %s22, 1
    %p229 = por %p227, %p228
    %p230 = scmp.ne.s32.totalorder %s221, %s222
    %p231 = scmp.eq.s32.totalorder %s22, 0
    %p232 = por %p230, %p231
    %p233 = scmp.ne.s32.totalorder %s221, %s222
    %p234 = scmp.eq.s32.totalorder %s23, 1
    %p235 = por %p233, %p234
    %p237 = scmp.ne.s32.totalorder %s222, %s236
    %p238 = scmp.eq.s32.totalorder %s23, 0
    %p239 = por %p237, %p238
    %s241 = sadd.s32 %s240, 1
    %p244 = scmp.eq.s32.totalorder %s17, 1
    %p245 = scmp.ne.s32.totalorder %s240, %s242
    %p246 = scmp.eq.s32.totalorder %s17, 0
    %p247 = por %p245, %p246
    %p248 = scmp.ne.s32.totalorder %s240, %s242
    %p249 = scmp.eq.s32.totalorder %s22, 1
    %p250 = por %p248, %p249
    %p251 = scmp.ne.s32.totalorder %s242, %s243
    %p252 = scmp.eq.s32.totalorder %s22, 0
    %p253 = por %p251, %p252
    %p254 = scmp.ne.s32.totalorder %s242, %s243
    %p255 = scmp.eq.s32.totalorder %s23, 1
    %p256 = por %p254, %p255
    %p258 = scmp.ne.s32.totalorder %s243, %s257
    %p259 = scmp.eq.s32.totalorder %s23, 0
    %p260 = por %p258, %p259
    %s261 = ssub.s32 %s17, %s24
    %p262 = scmp.eq.s32.totalorder %s261, 0
    %s264 = sadd.s32 %s263, 1
    %s265 = scalar_select %p262, %s263, %s264
    %p268 = pneg %p262
    %p269 = scmp.eq.s32.totalorder %s17, 1
    %p270 = por %p268, %p269
    %p271 = scmp.ne.s32.totalorder %s263, %s266
    %p272 = scmp.eq.s32.totalorder %s17, 0
    %p273 = por %p271, %p272
    %p274 = scmp.ne.s32.totalorder %s263, %s266
    %p275 = scmp.eq.s32.totalorder %s22, 1
    %p276 = por %p274, %p275
    %p277 = scmp.ne.s32.totalorder %s266, %s267
    %p278 = scmp.eq.s32.totalorder %s22, 0
    %p279 = por %p277, %p278
    %p280 = scmp.ne.s32.totalorder %s266, %s267
    %p281 = scmp.eq.s32.totalorder %s23, 1
    %p282 = por %p280, %p281
    %p284 = scmp.ne.s32.totalorder %s267, %s283
    %p285 = scmp.eq.s32.totalorder %s23, 0
    %p286 = por %p284, %p285
    %p287 = scmp.le.s32.totalorder 1, %s17
    %p288 = scmp.lt.s32.totalorder %s17, 3
    %p289 = pnand %p287, %p288
    %p290 = pneg %p289
    // Predicated region
    $region9: #{_lambda_.1} parent=5 // pred_check
      _
    $region10: #{_lambda_.1} parent=5 // pred_check_branch
      %292 = sbr.rel (%p289) target = $region12
    $region11: #{_lambda_.1} parent=5 // pred_region
      %s293 = ssub.s32 %s17, 1
      // Predicated region
      $region13: #{_lambda_.1} parent=11 // pred_check
        %p294 = pneg %p64
      $region14: #{_lambda_.1} parent=11 // pred_check_branch
        %296 = sbr.rel (%p294) target = $region16
      $region15: #{_lambda_.1} parent=11 // pred_region
        _
      $region16: #{_lambda_.1} parent=11 // pred_fallthru
        _
      // Predicated region
      $region17: #{_lambda_.1} parent=11 // pred_check
        %p297 = pneg %p85
      $region18: #{_lambda_.1} parent=11 // pred_check_branch
        %299 = sbr.rel (%p297) target = $region20
      $region19: #{_lambda_.1} parent=11 // pred_region
        _
      $region20: #{_lambda_.1} parent=11 // pred_fallthru
        _
      // Predicated region
      $region21: #{_lambda_.1} parent=11 // pred_check
        %p300 = pneg %p106
      $region22: #{_lambda_.1} parent=11 // pred_check_branch
        %302 = sbr.rel (%p300) target = $region24
      $region23: #{_lambda_.1} parent=11 // pred_region
        _
      $region24: #{_lambda_.1} parent=11 // pred_fallthru
        _
      // Predicated region
      $region25: #{_lambda_.1} parent=11 // pred_check
        %p303 = pneg %p127
      $region26: #{_lambda_.1} parent=11 // pred_check_branch
        %305 = sbr.rel (%p303) target = $region28
      $region27: #{_lambda_.1} parent=11 // pred_region
        _
      $region28: #{_lambda_.1} parent=11 // pred_fallthru
        _
      // Predicated region
      $region29: #{_lambda_.1} parent=11 // pred_check
        %p306 = pneg %p148
      $region30: #{_lambda_.1} parent=11 // pred_check_branch
        %308 = sbr.rel (%p306) target = $region32
      $region31: #{_lambda_.1} parent=11 // pred_region
        _
      $region32: #{_lambda_.1} parent=11 // pred_fallthru
        _
      // Predicated region
      $region33: #{_lambda_.1} parent=11 // pred_check
        %p309 = pneg %p169
      $region34: #{_lambda_.1} parent=11 // pred_check_branch
        %311 = sbr.rel (%p309) target = $region36
      $region35: #{_lambda_.1} parent=11 // pred_region
        _
      $region36: #{_lambda_.1} parent=11 // pred_fallthru
        _
      // Predicated region
      $region37: #{_lambda_.1} parent=11 // pred_check
        %p312 = pneg %p190
      $region38: #{_lambda_.1} parent=11 // pred_check_branch
        %314 = sbr.rel (%p312) target = $region40
      $region39: #{_lambda_.1} parent=11 // pred_region
        _
      $region40: #{_lambda_.1} parent=11 // pred_fallthru
        _
      // Predicated region
      $region41: #{_lambda_.1} parent=11 // pred_check
        %p315 = pneg %p211
      $region42: #{_lambda_.1} parent=11 // pred_check_branch
        %317 = sbr.rel (%p315) target = $region44
      $region43: #{_lambda_.1} parent=11 // pred_region
        _
      $region44: #{_lambda_.1} parent=11 // pred_fallthru
        _
      // Predicated region
      $region45: #{_lambda_.1} parent=11 // pred_check
        %p318 = pneg %p232
      $region46: #{_lambda_.1} parent=11 // pred_check_branch
        %320 = sbr.rel (%p318) target = $region48
      $region47: #{_lambda_.1} parent=11 // pred_region
        _
      $region48: #{_lambda_.1} parent=11 // pred_fallthru
        _
      // Predicated region
      $region49: #{_lambda_.1} parent=11 // pred_check
        %p321 = pneg %p253
      $region50: #{_lambda_.1} parent=11 // pred_check_branch
        %323 = sbr.rel (%p321) target = $region52
      $region51: #{_lambda_.1} parent=11 // pred_region
        _
      $region52: #{_lambda_.1} parent=11 // pred_fallthru
        _
    $region12: #{_lambda_.1} parent=5 // pred_fallthru
      _
    %p324 = scmp.lt.s32.totalorder %s17, 2
    // Predicated region
    $region53: #{_lambda_.1} parent=5 // pred_check
      %p325 = pneg %p324
    $region54: #{_lambda_.1} parent=5 // pred_check_branch
      %327 = sbr.rel (%p325) target = $region56
    $region55: #{_lambda_.1} parent=5 // pred_region
      // Predicated region
      $region57: #{_lambda_.1} parent=55 // pred_check
        %p328 = pneg %p37
      $region58: #{_lambda_.1} parent=55 // pred_check_branch
        %330 = sbr.rel (%p328) target = $region60
      $region59: #{_lambda_.1} parent=55 // pred_region
        %p331 = scmp.lt.s32.totalorder %s17, 1
        %s332 = scalar_select %p331, %s17, 1
        %s333 = smul.addr %s332, 2
        %s334 = smul.addr %s333, 4
        %s335 = scalar_lea.vmem %s0, %s334
      $region60: #{_lambda_.1} parent=55 // pred_fallthru
        _
    $region56: #{_lambda_.1} parent=5 // pred_fallthru
      _
    %p336 = scmp.le.s32.totalorder 1, %s17
    %p337 = scmp.lt.s32.totalorder %s17, 3
    %p338 = pnand %p336, %p337
    %p339 = pneg %p338
    // Predicated region
    $region61: #{_lambda_.1} parent=5 // pred_check
      _
    $region62: #{_lambda_.1} parent=5 // pred_check_branch
      %341 = sbr.rel (%p338) target = $region64
    $region63: #{_lambda_.1} parent=5 // pred_region
      %s342 = ssub.s32 %s17, 1
      %p343 = scmp.lt.s32.totalorder %s22, 1
      %s344 = scalar_select %p343, %s22, 1
      %s345 = smul.addr %s344, 2
      %s346 = smul.addr %s345, 4
      %s347 = scalar_lea.vmem %s0, %s346
      %p348 = pneg %p43
      %p349 = pneg %p40
      %p350 = pneg %p64
      %p351 = pneg %p61
      %p352 = pneg %p85
      %p353 = pneg %p82
      %p354 = pneg %p106
      %p355 = pneg %p103
      %p356 = pneg %p127
      %p357 = pneg %p124
      %p358 = pneg %p148
      %p359 = pneg %p145
      %p360 = pneg %p169
      %p361 = pneg %p166
      %p362 = pneg %p190
      %p363 = pneg %p187
      %p364 = pneg %p211
      %p365 = pneg %p208
      %p366 = pneg %p232
      %p367 = pneg %p229
      %p368 = pneg %p253
      %p369 = pneg %p250
      %p370 = pneg %p279
      %p371 = pneg %p276
      %p372 = scmp.lt.s32.totalorder %s22, 1
      %s373 = scalar_select %p372, %s22, 1
      %s374 = smul.addr %s373, 2
      %s375 = smul.addr %s374, 8
      %s376 = scalar_lea.vmem %s11, %s375
      %p377 = scmp.lt.s32.totalorder %s22, 1
      %s378 = scalar_select %p377, %s22, 1
      %s379 = smul.addr %s378, 2
      %s380 = smul.addr %s379, 4
      %s381 = scalar_lea.vmem %s0, %s380
      %p382 = scmp.lt.s32.totalorder %s22, 1
      %s383 = scalar_select %p382, %s22, 1
      %s384 = smul.addr %s383, 2
      %s385 = smul.addr %s384, 8
      %s386 = scalar_lea.vmem %s11, %s385
      %v388 = vld [vmem:[%s381] sm:$0xff]
      %v389 = vunpack.c.l.bf16 %v388
      %v390 = vunpack.c.h.bf16 %v388
      %v391 = vld [vmem:[%s1] sm:$0xff]
      %v392 = vadd.f32 %v389, %v390
      %393 = vadd.xlane.f32.xlu0 %v392
      %v394 = vpop.xlane.xlu0 %393
      %v395 = vmul.f32 %v389, %v389
      %v396 = vmul.f32 %v390, %v390
      %v397 = vadd.f32 %v395, %v396
      %398 = vadd.xlane.f32.xlu0 %v397
      %v399 = vpop.xlane.xlu0 %398
      %v400 = vmul.f32 %v394, %v391
      %vm401 = vcmask 31744
      %v402 = vsel %vm401, %v400, 0.0
      %v403 = vrot.slane %v402, 4
      %v404 = vadd.f32 %v402, %v403
      %v405 = vrot.slane %v404, 2
      %v406 = vadd.f32 %v404, %v405
      %v407 = vrot.slane %v406, 1
      %v408 = vadd.f32 %v406, %v407
      %v409 = vmul.f32 %v391, %v408
      %v410 = vsel %vm401, %v409, 0.0
      %411 = vadd.xlane.f32.xlu0 %v410
      %v412 = vpop.xlane.xlu0 %411
      %v413 = vmul.f32 %v412, 0.001953125
      %v414 = vmul.f32 %v399, %v391
      %v415 = vsel %vm401, %v414, 0.0
      %v416 = vrot.slane %v415, 4
      %v417 = vadd.f32 %v415, %v416
      %v418 = vrot.slane %v417, 2
      %v419 = vadd.f32 %v417, %v418
      %v420 = vrot.slane %v419, 1
      %v421 = vadd.f32 %v419, %v420
      %v422 = vmul.f32 %v391, %v421
      %v423 = vsel %vm401, %v422, 0.0
      %424 = vadd.xlane.f32.xlu0 %v423
      %v425 = vpop.xlane.xlu0 %424
      %v426 = vmul.f32 %v425, 0.001953125
      %v427 = vmul.f32 %v413, %v413
      %v428 = vsub.f32 %v426, %v427
      %v429 = vmax.f32 %v428, 0.0
      %v430 = vld [vmem:[%s2] sm:$0xff]
      %v431 = vadd.f32 %v429, 1e-05
      %v432 = vrsqrt.pop %v431
      %v433 = vmul.f32 %v430, %v432
      %v434 = vld [vmem:[%s3] sm:$0xff]
      %v435 = vmul.f32 %v413, %v433
      %v436 = vsub.f32 %v434, %v435
      %438 = vset.pattern.permute.xlu0 0
      %439 = vperm.xlu0 %438, %v433
      %v440 = vpop.permute.xlu0 %439
      %v442 = vmul.f32 %v389, %v440
      %v443 = vmul.f32 %v390, %v440
      %445 = vset.pattern.permute.xlu0 0
      %446 = vperm.xlu0 %445, %v436
      %v447 = vpop.permute.xlu0 %446
      %v449 = vadd.f32 %v442, %v447
      %v450 = vadd.f32 %v443, %v447
      %v451 = vmax.f32 %v449, 0.0
      %v452 = vmax.f32 %v450, 0.0
      %v453 = vld [vmem:[%s4] sm:$0xf]
      %v454 = vld [vmem:[%s4 + $0x4] sm:$0xf]
      %v455 = vld [vmem:[%s4 + $0x8] sm:$0xf]
      %v456 = vld [vmem:[%s4 + $0xc] sm:$0xf]
      %v457 = vpack.c.bf16 %v451, %v451
      %v458 = vpack.c.bf16 %v452, %v452
      %v459 = vld [vmem:[%s5] sm:$0xff]
      %v460 = vld [vmem:[%s5 + $0x8] sm:$0xff]
      %v461 = vld [vmem:[%s5 + $0x10] sm:$0xff]
      %v462 = vld [vmem:[%s5 + $0x18] sm:$0xff]
      %464 = vset.pattern.permute.xlu0 0
      %465 = vperm.xlu0 %464, %v459
      %v466 = vpop.permute.xlu0 %465
      %469 = vset.pattern.permute.xlu0 0
      %470 = vperm.xlu0 %469, %v460
      %v471 = vpop.permute.xlu0 %470
      %474 = vset.pattern.permute.xlu0 0
      %475 = vperm.xlu0 %474, %v461
      %v476 = vpop.permute.xlu0 %475
      %479 = vset.pattern.permute.xlu0 0
      %480 = vperm.xlu0 %479, %v462
      %v481 = vpop.permute.xlu0 %480
      %v487 = vunpack.c.l.b16 %v453
      %v488 = vunpack.c.l.b16 %v454
      %v489 = vunpack.c.l.b16 %v455
      %v490 = vunpack.c.l.b16 %v456
      %v491 = vpack.c.b16 %v488, %v487
      %v492 = vpack.c.b16 %v490, %v489
      %vm493 = vcmask 64512
      %v495 = vsel %vm493, %v491, 0
      %v498 = vsel %vm493, %v492, 0
      %vm500 = vcmask 1043456
      %v502 = vsel %vm500, %v457, 0
      %v505 = vsel %vm500, %v458, 0
      %507 = vmatprep.subr.bf16.mxu0 0
      %508 = vmatpush1.bf16.msra.mxu0 0
      %509 = vmatprep.subr.bf16.mxu0 0
      %510 = vmatpush1.bf16.msra.mxu0 0
      %511 = vmatprep.subr.bf16.mxu0 0
      %512 = vmatpush1.bf16.msra.mxu0 0
      %513 = vmatprep.subr.bf16.mxu0 0
      %514 = vmatpush1.bf16.msra.mxu0 0
      %515 = vmatprep.subr.bf16.mxu0 0
      %516 = vmatpush1.bf16.msra.mxu0 0
      %517 = vmatprep.subr.bf16.mxu0 0
      %518 = vmatpush1.bf16.msra.mxu0 0
      %519 = vmatprep.subr.bf16.mxu0 0
      %520 = vmatpush1.bf16.msra.mxu0 0
      %521 = vmatprep.subr.bf16.mxu0 %v505
      %522 = vmatpush1.bf16.msra.mxu0 %v502
      %523 = vmatprep.subr.bf16.mxu0 0
      %524 = vmatpush2.bf16.msra.mxu0 0
      %525 = vmatprep.subr.bf16.mxu0 0
      %526 = vmatpush2.bf16.msra.mxu0 0
      %527 = vmatprep.subr.bf16.mxu0 0
      %528 = vmatpush2.bf16.msra.mxu0 0
      %529 = vmatprep.subr.bf16.mxu0 0
      %530 = vmatpush2.bf16.msra.mxu0 0
      %531 = vmatprep.subr.bf16.mxu0 0
      %532 = vmatpush2.bf16.msra.mxu0 0
      %533 = vmatprep.subr.bf16.mxu0 0
      %534 = vmatpush2.bf16.msra.mxu0 0
      %535 = vmatprep.subr.bf16.mxu0 0
      %536 = vmatpush2.bf16.msra.mxu0 0
      %537 = vmatprep.subr.bf16.mxu0 0
      %538 = vmatpush2.bf16.msra.mxu0 0
      %539 = vmatprep.mubr.bf16.mxu0 0
      %540 = vmatmul.mubr.bf16.gmra.mxu0 %v495
      %v541 = vpop.f32.mrf.mxu0
      %v542 = vadd.f32 %v466, %v541
      %v543 = vpop.f32.mrf.mxu0
      %v544 = vadd.f32 %v466, %v543
      %v545 = vpop.f32.mrf.mxu0
      %v546 = vadd.f32 %v471, %v545
      %v547 = vpop.f32.mrf.mxu0
      %v548 = vadd.f32 %v471, %v547
      %549 = vmatprep.mubr.bf16.mxu0 0
      %550 = vmatmul.mubr.bf16.gmra.mxu0 %v498
      %v551 = vpop.f32.mrf.mxu0
      %v552 = vadd.f32 %v476, %v551
      %v553 = vpop.f32.mrf.mxu0
      %v554 = vadd.f32 %v476, %v553
      %v555 = vpop.f32.mrf.mxu0
      %v556 = vadd.f32 %v481, %v555
      %v557 = vpop.f32.mrf.mxu0
      %v558 = vadd.f32 %v481, %v557
      %559 = vdwg.mxu0
      %v560 = vld [vmem:[%s6] sm:$0xff]
      %v561 = vld [vmem:[%s6 + $0x8] sm:$0xff]
      %v562 = vld [vmem:[%s6 + $0x10] sm:$0xff]
      %v563 = vld [vmem:[%s6 + $0x18] sm:$0xff]
      %v564 = vadd.f32 %v542, %v544
      %565 = vadd.xlane.f32.xlu0 %v564
      %v566 = vpop.xlane.xlu0 %565
      %v567 = vadd.f32 %v546, %v548
      %568 = vadd.xlane.f32.xlu0 %v567
      %v569 = vpop.xlane.xlu0 %568
      %v570 = vadd.f32 %v552, %v554
      %571 = vadd.xlane.f32.xlu0 %v570
      %v572 = vpop.xlane.xlu0 %571
      %v573 = vadd.f32 %v556, %v558
      %574 = vadd.xlane.f32.xlu0 %v573
      %v575 = vpop.xlane.xlu0 %574
      %v576 = vmul.f32 %v542, %v542
      %v577 = vmul.f32 %v544, %v544
      %v578 = vmul.f32 %v546, %v546
      %v579 = vmul.f32 %v548, %v548
      %v580 = vmul.f32 %v552, %v552
      %v581 = vmul.f32 %v554, %v554
      %v582 = vmul.f32 %v556, %v556
      %v583 = vmul.f32 %v558, %v558
      %v584 = vadd.f32 %v576, %v577
      %585 = vadd.xlane.f32.xlu0 %v584
      %v586 = vpop.xlane.xlu0 %585
      %v587 = vadd.f32 %v578, %v579
      %588 = vadd.xlane.f32.xlu0 %v587
      %v589 = vpop.xlane.xlu0 %588
      %v590 = vadd.f32 %v580, %v581
      %591 = vadd.xlane.f32.xlu0 %v590
      %v592 = vpop.xlane.xlu0 %591
      %v593 = vadd.f32 %v582, %v583
      %594 = vadd.xlane.f32.xlu0 %v593
      %v595 = vpop.xlane.xlu0 %594
      %v596 = vmul.f32 %v566, %v560
      %v597 = vmul.f32 %v569, %v561
      %v598 = vmul.f32 %v572, %v562
      %v599 = vmul.f32 %v575, %v563
      %v600 = vsel %vm401, %v596, 0.0
      %v601 = vsel %vm401, %v597, 0.0
      %v602 = vadd.f32 %v600, %v601
      %v603 = vsel %vm401, %v598, 0.0
      %v604 = vadd.f32 %v602, %v603
      %v605 = vsel %vm401, %v599, 0.0
      %v606 = vadd.f32 %v604, %v605
      %v607 = vrot.slane %v606, 4
      %v608 = vadd.f32 %v606, %v607
      %v609 = vrot.slane %v608, 2
      %v610 = vadd.f32 %v608, %v609
      %v611 = vrot.slane %v610, 1
      %v612 = vadd.f32 %v610, %v611
      %v613 = vmul.f32 %v560, %v612
      %v614 = vmul.f32 %v561, %v612
      %v615 = vmul.f32 %v562, %v612
      %v616 = vmul.f32 %v563, %v612
      %v617 = vsel %vm401, %v613, 0.0
      %618 = vadd.xlane.f32.xlu0 %v617
      %v619 = vpop.xlane.xlu0 %618
      %v620 = vsel %vm401, %v614, 0.0
      %621 = vadd.xlane.f32.xlu0 %v620
      %v622 = vpop.xlane.xlu0 %621
      %v623 = vsel %vm401, %v615, 0.0
      %624 = vadd.xlane.f32.xlu0 %v623
      %v625 = vpop.xlane.xlu0 %624
      %v626 = vsel %vm401, %v616, 0.0
      %627 = vadd.xlane.f32.xlu0 %v626
      %v628 = vpop.xlane.xlu0 %627
      %v629 = vmul.f32 %v619, 0.00048828125
      %v630 = vmul.f32 %v622, 0.00048828125
      %v631 = vmul.f32 %v625, 0.00048828125
      %v632 = vmul.f32 %v628, 0.00048828125
      %v633 = vmul.f32 %v586, %v560
      %v634 = vmul.f32 %v589, %v561
      %v635 = vmul.f32 %v592, %v562
      %v636 = vmul.f32 %v595, %v563
      %v637 = vsel %vm401, %v633, 0.0
      %v638 = vsel %vm401, %v634, 0.0
      %v639 = vadd.f32 %v637, %v638
      %v640 = vsel %vm401, %v635, 0.0
      %v641 = vadd.f32 %v639, %v640
      %v642 = vsel %vm401, %v636, 0.0
      %v643 = vadd.f32 %v641, %v642
      %v644 = vrot.slane %v643, 4
      %v645 = vadd.f32 %v643, %v644
      %v646 = vrot.slane %v645, 2
      %v647 = vadd.f32 %v645, %v646
      %v648 = vrot.slane %v647, 1
      %v649 = vadd.f32 %v647, %v648
      %v650 = vmul.f32 %v560, %v649
      %v651 = vmul.f32 %v561, %v649
      %v652 = vmul.f32 %v562, %v649
      %v653 = vmul.f32 %v563, %v649
      %v654 = vsel %vm401, %v650, 0.0
      %655 = vadd.xlane.f32.xlu0 %v654
      %v656 = vpop.xlane.xlu0 %655
      %v657 = vsel %vm401, %v651, 0.0
      %658 = vadd.xlane.f32.xlu0 %v657
      %v659 = vpop.xlane.xlu0 %658
      %v660 = vsel %vm401, %v652, 0.0
      %661 = vadd.xlane.f32.xlu0 %v660
      %v662 = vpop.xlane.xlu0 %661
      %v663 = vsel %vm401, %v653, 0.0
      %664 = vadd.xlane.f32.xlu0 %v663
      %v665 = vpop.xlane.xlu0 %664
      %v666 = vmul.f32 %v656, 0.00048828125
      %v667 = vmul.f32 %v659, 0.00048828125
      %v668 = vmul.f32 %v662, 0.00048828125
      %v669 = vmul.f32 %v665, 0.00048828125
      %v670 = vmul.f32 %v629, %v629
      %v671 = vmul.f32 %v630, %v630
      %v672 = vmul.f32 %v631, %v631
      %v673 = vmul.f32 %v632, %v632
      %v674 = vsub.f32 %v666, %v670
      %v675 = vsub.f32 %v667, %v671
      %v676 = vsub.f32 %v668, %v672
      %v677 = vsub.f32 %v669, %v673
      %v678 = vmax.f32 %v674, 0.0
      %v679 = vmax.f32 %v675, 0.0
      %v680 = vmax.f32 %v676, 0.0
      %v681 = vmax.f32 %v677, 0.0
      %v682 = vld [vmem:[%s7] sm:$0xff]
      %v683 = vld [vmem:[%s7 + $0x8] sm:$0xff]
      %v684 = vld [vmem:[%s7 + $0x10] sm:$0xff]
      %v685 = vld [vmem:[%s7 + $0x18] sm:$0xff]
      %v686 = vadd.f32 %v678, 1e-05
      %v687 = vadd.f32 %v679, 1e-05
      %v688 = vadd.f32 %v680, 1e-05
      %v689 = vadd.f32 %v681, 1e-05
      %v690 = vrsqrt.pop %v686
      %v691 = vrsqrt.pop %v687
      %v692 = vrsqrt.pop %v688
      %v693 = vrsqrt.pop %v689
      %v694 = vmul.f32 %v682, %v690
      %v695 = vmul.f32 %v683, %v691
      %v696 = vmul.f32 %v684, %v692
      %v697 = vmul.f32 %v685, %v693
      %v698 = vld [vmem:[%s8] sm:$0xff]
      %v699 = vld [vmem:[%s8 + $0x8] sm:$0xff]
      %v700 = vld [vmem:[%s8 + $0x10] sm:$0xff]
      %v701 = vld [vmem:[%s8 + $0x18] sm:$0xff]
      %v702 = vmul.f32 %v629, %v694
      %v703 = vmul.f32 %v630, %v695
      %v704 = vmul.f32 %v631, %v696
      %v705 = vmul.f32 %v632, %v697
      %v706 = vsub.f32 %v698, %v702
      %v707 = vsub.f32 %v699, %v703
      %v708 = vsub.f32 %v700, %v704
      %v709 = vsub.f32 %v701, %v705
      %711 = vset.pattern.permute.xlu0 0
      %712 = vperm.xlu0 %711, %v694
      %v713 = vpop.permute.xlu0 %712
      %716 = vset.pattern.permute.xlu0 0
      %717 = vperm.xlu0 %716, %v695
      %v718 = vpop.permute.xlu0 %717
      %721 = vset.pattern.permute.xlu0 0
      %722 = vperm.xlu0 %721, %v696
      %v723 = vpop.permute.xlu0 %722
      %726 = vset.pattern.permute.xlu0 0
      %727 = vperm.xlu0 %726, %v697
      %v728 = vpop.permute.xlu0 %727
      %v730 = vmul.f32 %v542, %v713
      %v731 = vmul.f32 %v544, %v713
      %v732 = vmul.f32 %v546, %v718
      %v733 = vmul.f32 %v548, %v718
      %v734 = vmul.f32 %v552, %v723
      %v735 = vmul.f32 %v554, %v723
      %v736 = vmul.f32 %v556, %v728
      %v737 = vmul.f32 %v558, %v728
      %739 = vset.pattern.permute.xlu0 0
      %740 = vperm.xlu0 %739, %v706
      %v741 = vpop.permute.xlu0 %740
      %744 = vset.pattern.permute.xlu0 0
      %745 = vperm.xlu0 %744, %v707
      %v746 = vpop.permute.xlu0 %745
      %749 = vset.pattern.permute.xlu0 0
      %750 = vperm.xlu0 %749, %v708
      %v751 = vpop.permute.xlu0 %750
      %754 = vset.pattern.permute.xlu0 0
      %755 = vperm.xlu0 %754, %v709
      %v756 = vpop.permute.xlu0 %755
      %v758 = vadd.f32 %v730, %v741
      %v759 = vadd.f32 %v731, %v741
      %v760 = vadd.f32 %v732, %v746
      %v761 = vadd.f32 %v733, %v746
      %v762 = vadd.f32 %v734, %v751
      %v763 = vadd.f32 %v735, %v751
      %v764 = vadd.f32 %v736, %v756
      %v765 = vadd.f32 %v737, %v756
      %v766 = vmax.f32 %v758, 0.0
      %v767 = vmax.f32 %v759, 0.0
      %v768 = vmax.f32 %v760, 0.0
      %v769 = vmax.f32 %v761, 0.0
      %v770 = vmax.f32 %v762, 0.0
      %v771 = vmax.f32 %v763, 0.0
      %v772 = vmax.f32 %v764, 0.0
      %v773 = vmax.f32 %v765, 0.0
      %v774 = vpack.c.bf16 %v768, %v766
      %v775 = vpack.c.bf16 %v769, %v767
      %v776 = vpack.c.bf16 %v772, %v770
      %v777 = vpack.c.bf16 %v773, %v771
      %v778 = vlaneseq
      %v779 = vand.u32 %v778, 127
      %v780 = vadd.s32 %v779, 128
      %v781 = vcvt.s32.f32 %v779
      %v782 = vcvt.s32.f32 %v780
      %v783 = vadd.f32 %v781, 0.5
      %v784 = vadd.f32 %v782, 0.5
      %v785 = vmul.f32 %v783, 0.0625
      %v786 = vmul.f32 %v784, 0.0625
      %v787 = vfloor.f32 %v785
      %v788 = vfloor.f32 %v786
      %v789 = vmul.f32 %v787, 16.0
      %v790 = vmul.f32 %v788, 16.0
      %v791 = vsub.f32 %v781, %v789
      %v792 = vsub.f32 %v782, %v790
      %v793 = vld [vmem:[%s9] sm:$0xf]
      %vm794 = vcmask 261120
      %v796 = vsel %vm794, %v793, 0
      %798 = vmatprep.subr.bf16.mxu0 0
      %799 = vmatpush1.bf16.msra.mxu0 0
      %800 = vmatprep.subr.bf16.mxu0 0
      %801 = vmatpush1.bf16.msra.mxu0 0
      %802 = vmatprep.subr.bf16.mxu0 0
      %803 = vmatpush1.bf16.msra.mxu0 0
      %804 = vmatprep.subr.bf16.mxu0 0
      %805 = vmatpush1.bf16.msra.mxu0 0
      %806 = vmatprep.subr.bf16.mxu0 0
      %807 = vmatpush1.bf16.msra.mxu0 0
      %808 = vmatprep.subr.bf16.mxu0 0
      %809 = vmatpush1.bf16.msra.mxu0 0
      %810 = vmatprep.subr.bf16.mxu0 %v777
      %811 = vmatpush1.bf16.msra.mxu0 %v776
      %812 = vmatprep.subr.bf16.mxu0 %v775
      %813 = vmatpush1.bf16.msra.mxu0 %v774
      %814 = vmatprep.subr.bf16.mxu0 0
      %815 = vmatpush2.bf16.msra.mxu0 0
      %816 = vmatprep.subr.bf16.mxu0 0
      %817 = vmatpush2.bf16.msra.mxu0 0
      %818 = vmatprep.subr.bf16.mxu0 0
      %819 = vmatpush2.bf16.msra.mxu0 0
      %820 = vmatprep.subr.bf16.mxu0 0
      %821 = vmatpush2.bf16.msra.mxu0 0
      %822 = vmatprep.subr.bf16.mxu0 0
      %823 = vmatpush2.bf16.msra.mxu0 0
      %824 = vmatprep.subr.bf16.mxu0 0
      %825 = vmatpush2.bf16.msra.mxu0 0
      %826 = vmatprep.subr.bf16.mxu0 0
      %827 = vmatpush2.bf16.msra.mxu0 0
      %828 = vmatprep.subr.bf16.mxu0 0
      %829 = vmatpush2.bf16.msra.mxu0 0
      %830 = vmatprep.mubr.bf16.mxu0 0
      %831 = vmatmul.mubr.bf16.gmra.mxu0 %v796
      %v832 = vpop.f32.mrf.mxu0
      %v833 = vadd.f32 0.0, %v832
      %v834 = vpop.f32.mrf.mxu0
      %v835 = vadd.f32 0.0, %v834
      %v836 = vpop.f32.mrf.mxu0
      %v837 = vpop.f32.mrf.mxu0
      %838 = vdwg.mxu0
      %839 = vrot.lane.b32.xlu0 %v833, 17
      %v840 = vpop.permute.xlu0 %839
      %841 = vrot.lane.b32.xlu0 %v835, 17
      %v842 = vpop.permute.xlu0 %841
      %vm843 = vcmp.lt.s32.totalorder %v779, 17
      %v844 = vsel %vm843, %v840, %v842
      %v845 = vsel %vm843, %v842, %v840
      %vm846 = vcmp.ge.f32.partialorder %v787, 1.0
      %vm847 = vcmp.ge.f32.partialorder %v788, 1.0
      %vm848 = vcmp.ge.f32.partialorder %v791, 1.0
      %vm849 = vcmp.ge.f32.partialorder %v792, 1.0
      %vm850 = vmand %vm846, %vm848
      %vm851 = vmand %vm847, %vm849
      %v852 = vsel %vm850, 1, 0
      %v853 = vsel %vm851, 1, 0
      %vm854 = vcmp.eq.s32.totalorder %v852, 1
      %vm855 = vcmp.eq.s32.totalorder %v853, 1
      %v856 = vsel %vm854, %v845, 0.0
      %v857 = vsel %vm855, %v844, 0.0
      %s858 = scalar_lea.vmem %s9, 4
      %v859 = vld [vmem:[%s858] sm:$0xf]
      %v861 = vsel %vm794, %v859, 0
      %863 = vmatprep.subr.bf16.mxu0 0
      %864 = vmatpush1.bf16.msra.mxu0 0
      %865 = vmatprep.subr.bf16.mxu0 0
      %866 = vmatpush1.bf16.msra.mxu0 0
      %867 = vmatprep.subr.bf16.mxu0 0
      %868 = vmatpush1.bf16.msra.mxu0 0
      %869 = vmatprep.subr.bf16.mxu0 0
      %870 = vmatpush1.bf16.msra.mxu0 0
      %871 = vmatprep.subr.bf16.mxu0 0
      %872 = vmatpush1.bf16.msra.mxu0 0
      %873 = vmatprep.subr.bf16.mxu0 0
      %874 = vmatpush1.bf16.msra.mxu0 0
      %875 = vmatprep.subr.bf16.mxu0 %v777
      %876 = vmatpush1.bf16.msra.mxu0 %v776
      %877 = vmatprep.subr.bf16.mxu0 %v775
      %878 = vmatpush1.bf16.msra.mxu0 %v774
      %879 = vmatprep.subr.bf16.mxu0 0
      %880 = vmatpush2.bf16.msra.mxu0 0
      %881 = vmatprep.subr.bf16.mxu0 0
      %882 = vmatpush2.bf16.msra.mxu0 0
      %883 = vmatprep.subr.bf16.mxu0 0
      %884 = vmatpush2.bf16.msra.mxu0 0
      %885 = vmatprep.subr.bf16.mxu0 0
      %886 = vmatpush2.bf16.msra.mxu0 0
      %887 = vmatprep.subr.bf16.mxu0 0
      %888 = vmatpush2.bf16.msra.mxu0 0
      %889 = vmatprep.subr.bf16.mxu0 0
      %890 = vmatpush2.bf16.msra.mxu0 0
      %891 = vmatprep.subr.bf16.mxu0 0
      %892 = vmatpush2.bf16.msra.mxu0 0
      %893 = vmatprep.subr.bf16.mxu0 0
      %894 = vmatpush2.bf16.msra.mxu0 0
      %895 = vmatprep.mubr.bf16.mxu0 0
      %896 = vmatmul.mubr.bf16.gmra.mxu0 %v861
      %v897 = vpop.f32.mrf.mxu0
      %v898 = vadd.f32 0.0, %v897
      %v899 = vpop.f32.mrf.mxu0
      %v900 = vadd.f32 0.0, %v899
      %v901 = vpop.f32.mrf.mxu0
      %v902 = vpop.f32.mrf.mxu0
      %903 = vdwg.mxu0
      %904 = vrot.lane.b32.xlu0 %v898, 16
      %v905 = vpop.permute.xlu0 %904
      %906 = vrot.lane.b32.xlu0 %v900, 16
      %v907 = vpop.permute.xlu0 %906
      %vm908 = vcmp.lt.s32.totalorder %v779, 16
      %v909 = vsel %vm908, %v905, %v907
      %v910 = vsel %vm908, %v907, %v905
      %v911 = vsel %vm846, 1, 0
      %v912 = vsel %vm847, 1, 0
      %vm913 = vcmp.eq.s32.totalorder %v911, 1
      %vm914 = vcmp.eq.s32.totalorder %v912, 1
      %v915 = vsel %vm913, %v910, 0.0
      %v916 = vsel %vm914, %v909, 0.0
      %v917 = vadd.f32 %v856, %v915
      %v918 = vadd.f32 %v857, %v916
      %s919 = scalar_lea.vmem %s9, 8
      %v920 = vld [vmem:[%s919] sm:$0xf]
      %v922 = vsel %vm794, %v920, 0
      %924 = vmatprep.subr.bf16.mxu0 0
      %925 = vmatpush1.bf16.msra.mxu0 0
      %926 = vmatprep.subr.bf16.mxu0 0
      %927 = vmatpush1.bf16.msra.mxu0 0
      %928 = vmatprep.subr.bf16.mxu0 0
      %929 = vmatpush1.bf16.msra.mxu0 0
      %930 = vmatprep.subr.bf16.mxu0 0
      %931 = vmatpush1.bf16.msra.mxu0 0
      %932 = vmatprep.subr.bf16.mxu0 0
      %933 = vmatpush1.bf16.msra.mxu0 0
      %934 = vmatprep.subr.bf16.mxu0 0
      %935 = vmatpush1.bf16.msra.mxu0 0
      %936 = vmatprep.subr.bf16.mxu0 %v777
      %937 = vmatpush1.bf16.msra.mxu0 %v776
      %938 = vmatprep.subr.bf16.mxu0 %v775
      %939 = vmatpush1.bf16.msra.mxu0 %v774
      %940 = vmatprep.subr.bf16.mxu0 0
      %941 = vmatpush2.bf16.msra.mxu0 0
      %942 = vmatprep.subr.bf16.mxu0 0
      %943 = vmatpush2.bf16.msra.mxu0 0
      %944 = vmatprep.subr.bf16.mxu0 0
      %945 = vmatpush2.bf16.msra.mxu0 0
      %946 = vmatprep.subr.bf16.mxu0 0
      %947 = vmatpush2.bf16.msra.mxu0 0
      %948 = vmatprep.subr.bf16.mxu0 0
      %949 = vmatpush2.bf16.msra.mxu0 0
      %950 = vmatprep.subr.bf16.mxu0 0
      %951 = vmatpush2.bf16.msra.mxu0 0
      %952 = vmatprep.subr.bf16.mxu0 0
      %953 = vmatpush2.bf16.msra.mxu0 0
      %954 = vmatprep.subr.bf16.mxu0 0
      %955 = vmatpush2.bf16.msra.mxu0 0
      %956 = vmatprep.mubr.bf16.mxu0 0
      %957 = vmatmul.mubr.bf16.gmra.mxu0 %v922
      %v958 = vpop.f32.mrf.mxu0
      %v959 = vadd.f32 0.0, %v958
      %v960 = vpop.f32.mrf.mxu0
      %v961 = vadd.f32 0.0, %v960
      %v962 = vpop.f32.mrf.mxu0
      %v963 = vpop.f32.mrf.mxu0
      %964 = vdwg.mxu0
      %965 = vrot.lane.b32.xlu0 %v959, 15
      %v966 = vpop.permute.xlu0 %965
      %967 = vrot.lane.b32.xlu0 %v961, 15
      %v968 = vpop.permute.xlu0 %967
      %vm969 = vcmp.lt.s32.totalorder %v779, 15
      %v970 = vsel %vm969, %v966, %v968
      %v971 = vsel %vm969, %v968, %v966
      %vm972 = vcmp.lt.f32.partialorder %v791, 15.0
      %vm973 = vcmp.lt.f32.partialorder %v792, 15.0
      %vm974 = vmand %vm846, %vm972
      %vm975 = vmand %vm847, %vm973
      %v976 = vsel %vm974, 1, 0
      %v977 = vsel %vm975, 1, 0
      %vm978 = vcmp.eq.s32.totalorder %v976, 1
      %vm979 = vcmp.eq.s32.totalorder %v977, 1
      %v980 = vsel %vm978, %v971, 0.0
      %v981 = vsel %vm979, %v970, 0.0
      %v982 = vadd.f32 %v917, %v980
      %v983 = vadd.f32 %v918, %v981
      %s984 = scalar_lea.vmem %s9, 12
      %v985 = vld [vmem:[%s984] sm:$0xf]
      %v987 = vsel %vm794, %v985, 0
      %989 = vmatprep.subr.bf16.mxu0 0
      %990 = vmatpush1.bf16.msra.mxu0 0
      %991 = vmatprep.subr.bf16.mxu0 0
      %992 = vmatpush1.bf16.msra.mxu0 0
      %993 = vmatprep.subr.bf16.mxu0 0
      %994 = vmatpush1.bf16.msra.mxu0 0
      %995 = vmatprep.subr.bf16.mxu0 0
      %996 = vmatpush1.bf16.msra.mxu0 0
      %997 = vmatprep.subr.bf16.mxu0 0
      %998 = vmatpush1.bf16.msra.mxu0 0
      %999 = vmatprep.subr.bf16.mxu0 0
      %1000 = vmatpush1.bf16.msra.mxu0 0
      %1001 = vmatprep.subr.bf16.mxu0 %v777
      %1002 = vmatpush1.bf16.msra.mxu0 %v776
      %1003 = vmatprep.subr.bf16.mxu0 %v775
      %1004 = vmatpush1.bf16.msra.mxu0 %v774
      %1005 = vmatprep.subr.bf16.mxu0 0
      %1006 = vmatpush2.bf16.msra.mxu0 0
      %1007 = vmatprep.subr.bf16.mxu0 0
      %1008 = vmatpush2.bf16.msra.mxu0 0
      %1009 = vmatprep.subr.bf16.mxu0 0
      %1010 = vmatpush2.bf16.msra.mxu0 0
      %1011 = vmatprep.subr.bf16.mxu0 0
      %1012 = vmatpush2.bf16.msra.mxu0 0
      %1013 = vmatprep.subr.bf16.mxu0 0
      %1014 = vmatpush2.bf16.msra.mxu0 0
      %1015 = vmatprep.subr.bf16.mxu0 0
      %1016 = vmatpush2.bf16.msra.mxu0 0
      %1017 = vmatprep.subr.bf16.mxu0 0
      %1018 = vmatpush2.bf16.msra.mxu0 0
      %1019 = vmatprep.subr.bf16.mxu0 0
      %1020 = vmatpush2.bf16.msra.mxu0 0
      %1021 = vmatprep.mubr.bf16.mxu0 0
      %1022 = vmatmul.mubr.bf16.gmra.mxu0 %v987
      %v1023 = vpop.f32.mrf.mxu0
      %v1024 = vadd.f32 0.0, %v1023
      %v1025 = vpop.f32.mrf.mxu0
      %v1026 = vadd.f32 0.0, %v1025
      %v1027 = vpop.f32.mrf.mxu0
      %v1028 = vpop.f32.mrf.mxu0
      %1029 = vdwg.mxu0
      %1030 = vrot.lane.b32.xlu0 %v1024, 1
      %v1031 = vpop.permute.xlu0 %1030
      %1032 = vrot.lane.b32.xlu0 %v1026, 1
      %v1033 = vpop.permute.xlu0 %1032
      %vm1034 = vcmp.lt.s32.totalorder %v779, 1
      %v1035 = vsel %vm1034, %v1031, %v1033
      %v1036 = vsel %vm1034, %v1033, %v1031
      %v1037 = vsel %vm848, 1, 0
      %v1038 = vsel %vm849, 1, 0
      %vm1039 = vcmp.eq.s32.totalorder %v1037, 1
      %vm1040 = vcmp.eq.s32.totalorder %v1038, 1
      %v1041 = vsel %vm1039, %v1036, 0.0
      %v1042 = vsel %vm1040, %v1035, 0.0
      %v1043 = vadd.f32 %v982, %v1041
      %v1044 = vadd.f32 %v983, %v1042
      %s1045 = scalar_lea.vmem %s9, 16
      %v1046 = vld [vmem:[%s1045] sm:$0xf]
      %v1048 = vsel %vm794, %v1046, 0
      %1050 = vmatprep.subr.bf16.mxu0 0
      %1051 = vmatpush1.bf16.msra.mxu0 0
      %1052 = vmatprep.subr.bf16.mxu0 0
      %1053 = vmatpush1.bf16.msra.mxu0 0
      %1054 = vmatprep.subr.bf16.mxu0 0
      %1055 = vmatpush1.bf16.msra.mxu0 0
      %1056 = vmatprep.subr.bf16.mxu0 0
      %1057 = vmatpush1.bf16.msra.mxu0 0
      %1058 = vmatprep.subr.bf16.mxu0 0
      %1059 = vmatpush1.bf16.msra.mxu0 0
      %1060 = vmatprep.subr.bf16.mxu0 0
      %1061 = vmatpush1.bf16.msra.mxu0 0
      %1062 = vmatprep.subr.bf16.mxu0 %v777
      %1063 = vmatpush1.bf16.msra.mxu0 %v776
      %1064 = vmatprep.subr.bf16.mxu0 %v775
      %1065 = vmatpush1.bf16.msra.mxu0 %v774
      %1066 = vmatprep.subr.bf16.mxu0 0
      %1067 = vmatpush2.bf16.msra.mxu0 0
      %1068 = vmatprep.subr.bf16.mxu0 0
      %1069 = vmatpush2.bf16.msra.mxu0 0
      %1070 = vmatprep.subr.bf16.mxu0 0
      %1071 = vmatpush2.bf16.msra.mxu0 0
      %1072 = vmatprep.subr.bf16.mxu0 0
      %1073 = vmatpush2.bf16.msra.mxu0 0
      %1074 = vmatprep.subr.bf16.mxu0 0
      %1075 = vmatpush2.bf16.msra.mxu0 0
      %1076 = vmatprep.subr.bf16.mxu0 0
      %1077 = vmatpush2.bf16.msra.mxu0 0
      %1078 = vmatprep.subr.bf16.mxu0 0
      %1079 = vmatpush2.bf16.msra.mxu0 0
      %1080 = vmatprep.subr.bf16.mxu0 0
      %1081 = vmatpush2.bf16.msra.mxu0 0
      %1082 = vmatprep.mubr.bf16.mxu0 0
      %1083 = vmatmul.mubr.bf16.gmra.mxu0 %v1048
      %v1084 = vpop.f32.mrf.mxu0
      %v1085 = vadd.f32 0.0, %v1084
      %v1086 = vpop.f32.mrf.mxu0
      %v1087 = vadd.f32 0.0, %v1086
      %v1088 = vpop.f32.mrf.mxu0
      %v1089 = vpop.f32.mrf.mxu0
      %1090 = vdwg.mxu0
      %v1091 = vadd.f32 %v1043, %v1085
      %v1092 = vadd.f32 %v1044, %v1087
      %s1093 = scalar_lea.vmem %s9, 20
      %v1094 = vld [vmem:[%s1093] sm:$0xf]
      %v1096 = vsel %vm794, %v1094, 0
      %1098 = vmatprep.subr.bf16.mxu0 0
      %1099 = vmatpush1.bf16.msra.mxu0 0
      %1100 = vmatprep.subr.bf16.mxu0 0
      %1101 = vmatpush1.bf16.msra.mxu0 0
      %1102 = vmatprep.subr.bf16.mxu0 0
      %1103 = vmatpush1.bf16.msra.mxu0 0
      %1104 = vmatprep.subr.bf16.mxu0 0
      %1105 = vmatpush1.bf16.msra.mxu0 0
      %1106 = vmatprep.subr.bf16.mxu0 0
      %1107 = vmatpush1.bf16.msra.mxu0 0
      %1108 = vmatprep.subr.bf16.mxu0 0
      %1109 = vmatpush1.bf16.msra.mxu0 0
      %1110 = vmatprep.subr.bf16.mxu0 %v777
      %1111 = vmatpush1.bf16.msra.mxu0 %v776
      %1112 = vmatprep.subr.bf16.mxu0 %v775
      %1113 = vmatpush1.bf16.msra.mxu0 %v774
      %1114 = vmatprep.subr.bf16.mxu0 0
      %1115 = vmatpush2.bf16.msra.mxu0 0
      %1116 = vmatprep.subr.bf16.mxu0 0
      %1117 = vmatpush2.bf16.msra.mxu0 0
      %1118 = vmatprep.subr.bf16.mxu0 0
      %1119 = vmatpush2.bf16.msra.mxu0 0
      %1120 = vmatprep.subr.bf16.mxu0 0
      %1121 = vmatpush2.bf16.msra.mxu0 0
      %1122 = vmatprep.subr.bf16.mxu0 0
      %1123 = vmatpush2.bf16.msra.mxu0 0
      %1124 = vmatprep.subr.bf16.mxu0 0
      %1125 = vmatpush2.bf16.msra.mxu0 0
      %1126 = vmatprep.subr.bf16.mxu0 0
      %1127 = vmatpush2.bf16.msra.mxu0 0
      %1128 = vmatprep.subr.bf16.mxu0 0
      %1129 = vmatpush2.bf16.msra.mxu0 0
      %1130 = vmatprep.mubr.bf16.mxu0 0
      %1131 = vmatmul.mubr.bf16.gmra.mxu0 %v1096
      %v1132 = vpop.f32.mrf.mxu0
      %v1133 = vadd.f32 0.0, %v1132
      %v1134 = vpop.f32.mrf.mxu0
      %v1135 = vadd.f32 0.0, %v1134
      %v1136 = vpop.f32.mrf.mxu0
      %v1137 = vpop.f32.mrf.mxu0
      %1138 = vdwg.mxu0
      %1139 = vrot.lane.b32.xlu0 %v1133, 127
      %v1140 = vpop.permute.xlu0 %1139
      %1141 = vrot.lane.b32.xlu0 %v1135, 127
      %v1142 = vpop.permute.xlu0 %1141
      %vm1143 = vcmp.lt.s32.totalorder %v779, 127
      %v1144 = vsel %vm1143, %v1140, %v1142
      %v1145 = vsel %vm1143, %v1142, %v1140
      %v1146 = vsel %vm972, 1, 0
      %v1147 = vsel %vm973, 1, 0
      %vm1148 = vcmp.eq.s32.totalorder %v1146, 1
      %vm1149 = vcmp.eq.s32.totalorder %v1147, 1
      %v1150 = vsel %vm1148, %v1144, 0.0
      %v1151 = vsel %vm1149, %v1145, 0.0
      %v1152 = vadd.f32 %v1091, %v1150
      %v1153 = vadd.f32 %v1092, %v1151
      %s1154 = scalar_lea.vmem %s9, 24
      %v1155 = vld [vmem:[%s1154] sm:$0xf]
      %v1157 = vsel %vm794, %v1155, 0
      %1159 = vmatprep.subr.bf16.mxu0 0
      %1160 = vmatpush1.bf16.msra.mxu0 0
      %1161 = vmatprep.subr.bf16.mxu0 0
      %1162 = vmatpush1.bf16.msra.mxu0 0
      %1163 = vmatprep.subr.bf16.mxu0 0
      %1164 = vmatpush1.bf16.msra.mxu0 0
      %1165 = vmatprep.subr.bf16.mxu0 0
      %1166 = vmatpush1.bf16.msra.mxu0 0
      %1167 = vmatprep.subr.bf16.mxu0 0
      %1168 = vmatpush1.bf16.msra.mxu0 0
      %1169 = vmatprep.subr.bf16.mxu0 0
      %1170 = vmatpush1.bf16.msra.mxu0 0
      %1171 = vmatprep.subr.bf16.mxu0 %v777
      %1172 = vmatpush1.bf16.msra.mxu0 %v776
      %1173 = vmatprep.subr.bf16.mxu0 %v775
      %1174 = vmatpush1.bf16.msra.mxu0 %v774
      %1175 = vmatprep.subr.bf16.mxu0 0
      %1176 = vmatpush2.bf16.msra.mxu0 0
      %1177 = vmatprep.subr.bf16.mxu0 0
      %1178 = vmatpush2.bf16.msra.mxu0 0
      %1179 = vmatprep.subr.bf16.mxu0 0
      %1180 = vmatpush2.bf16.msra.mxu0 0
      %1181 = vmatprep.subr.bf16.mxu0 0
      %1182 = vmatpush2.bf16.msra.mxu0 0
      %1183 = vmatprep.subr.bf16.mxu0 0
      %1184 = vmatpush2.bf16.msra.mxu0 0
      %1185 = vmatprep.subr.bf16.mxu0 0
      %1186 = vmatpush2.bf16.msra.mxu0 0
      %1187 = vmatprep.subr.bf16.mxu0 0
      %1188 = vmatpush2.bf16.msra.mxu0 0
      %1189 = vmatprep.subr.bf16.mxu0 0
      %1190 = vmatpush2.bf16.msra.mxu0 0
      %1191 = vmatprep.mubr.bf16.mxu0 0
      %1192 = vmatmul.mubr.bf16.gmra.mxu0 %v1157
      %v1193 = vpop.f32.mrf.mxu0
      %v1194 = vadd.f32 0.0, %v1193
      %v1195 = vpop.f32.mrf.mxu0
      %v1196 = vadd.f32 0.0, %v1195
      %v1197 = vpop.f32.mrf.mxu0
      %v1198 = vpop.f32.mrf.mxu0
      %1199 = vdwg.mxu0
      %1200 = vrot.lane.b32.xlu0 %v1194, 113
      %v1201 = vpop.permute.xlu0 %1200
      %1202 = vrot.lane.b32.xlu0 %v1196, 113
      %v1203 = vpop.permute.xlu0 %1202
      %vm1204 = vcmp.lt.s32.totalorder %v779, 113
      %v1205 = vsel %vm1204, %v1201, %v1203
      %v1206 = vsel %vm1204, %v1203, %v1201
      %vm1207 = vcmp.lt.f32.partialorder %v787, 15.0
      %vm1208 = vcmp.lt.f32.partialorder %v788, 15.0
      %vm1209 = vmand %vm1207, %vm848
      %vm1210 = vmand %vm1208, %vm849
      %v1211 = vsel %vm1209, 1, 0
      %v1212 = vsel %vm1210, 1, 0
      %vm1213 = vcmp.eq.s32.totalorder %v1211, 1
      %vm1214 = vcmp.eq.s32.totalorder %v1212, 1
      %v1215 = vsel %vm1213, %v1205, 0.0
      %v1216 = vsel %vm1214, %v1206, 0.0
      %v1217 = vadd.f32 %v1152, %v1215
      %v1218 = vadd.f32 %v1153, %v1216
      %s1219 = scalar_lea.vmem %s9, 28
      %v1220 = vld [vmem:[%s1219] sm:$0xf]
      %v1222 = vsel %vm794, %v1220, 0
      %1224 = vmatprep.subr.bf16.mxu0 0
      %1225 = vmatpush1.bf16.msra.mxu0 0
      %1226 = vmatprep.subr.bf16.mxu0 0
      %1227 = vmatpush1.bf16.msra.mxu0 0
      %1228 = vmatprep.subr.bf16.mxu0 0
      %1229 = vmatpush1.bf16.msra.mxu0 0
      %1230 = vmatprep.subr.bf16.mxu0 0
      %1231 = vmatpush1.bf16.msra.mxu0 0
      %1232 = vmatprep.subr.bf16.mxu0 0
      %1233 = vmatpush1.bf16.msra.mxu0 0
      %1234 = vmatprep.subr.bf16.mxu0 0
      %1235 = vmatpush1.bf16.msra.mxu0 0
      %1236 = vmatprep.subr.bf16.mxu0 %v777
      %1237 = vmatpush1.bf16.msra.mxu0 %v776
      %1238 = vmatprep.subr.bf16.mxu0 %v775
      %1239 = vmatpush1.bf16.msra.mxu0 %v774
      %1240 = vmatprep.subr.bf16.mxu0 0
      %1241 = vmatpush2.bf16.msra.mxu0 0
      %1242 = vmatprep.subr.bf16.mxu0 0
      %1243 = vmatpush2.bf16.msra.mxu0 0
      %1244 = vmatprep.subr.bf16.mxu0 0
      %1245 = vmatpush2.bf16.msra.mxu0 0
      %1246 = vmatprep.subr.bf16.mxu0 0
      %1247 = vmatpush2.bf16.msra.mxu0 0
      %1248 = vmatprep.subr.bf16.mxu0 0
      %1249 = vmatpush2.bf16.msra.mxu0 0
      %1250 = vmatprep.subr.bf16.mxu0 0
      %1251 = vmatpush2.bf16.msra.mxu0 0
      %1252 = vmatprep.subr.bf16.mxu0 0
      %1253 = vmatpush2.bf16.msra.mxu0 0
      %1254 = vmatprep.subr.bf16.mxu0 0
      %1255 = vmatpush2.bf16.msra.mxu0 0
      %1256 = vmatprep.mubr.bf16.mxu0 0
      %1257 = vmatmul.mubr.bf16.gmra.mxu0 %v1222
      %v1258 = vpop.f32.mrf.mxu0
      %v1259 = vadd.f32 0.0, %v1258
      %v1260 = vpop.f32.mrf.mxu0
      %v1261 = vadd.f32 0.0, %v1260
      %v1262 = vpop.f32.mrf.mxu0
      %v1263 = vpop.f32.mrf.mxu0
      %1264 = vdwg.mxu0
      %1265 = vrot.lane.b32.xlu0 %v1259, 112
      %v1266 = vpop.permute.xlu0 %1265
      %1267 = vrot.lane.b32.xlu0 %v1261, 112
      %v1268 = vpop.permute.xlu0 %1267
      %vm1269 = vcmp.lt.s32.totalorder %v779, 112
      %v1270 = vsel %vm1269, %v1266, %v1268
      %v1271 = vsel %vm1269, %v1268, %v1266
      %v1272 = vsel %vm1207, 1, 0
      %v1273 = vsel %vm1208, 1, 0
      %vm1274 = vcmp.eq.s32.totalorder %v1272, 1
      %vm1275 = vcmp.eq.s32.totalorder %v1273, 1
      %v1276 = vsel %vm1274, %v1270, 0.0
      %v1277 = vsel %vm1275, %v1271, 0.0
      %v1278 = vadd.f32 %v1217, %v1276
      %v1279 = vadd.f32 %v1218, %v1277
      %s1280 = scalar_lea.vmem %s9, 32
      %v1281 = vld [vmem:[%s1280] sm:$0xf]
      %v1283 = vsel %vm794, %v1281, 0
      %1285 = vmatprep.subr.bf16.mxu0 0
      %1286 = vmatpush1.bf16.msra.mxu0 0
      %1287 = vmatprep.subr.bf16.mxu0 0
      %1288 = vmatpush1.bf16.msra.mxu0 0
      %1289 = vmatprep.subr.bf16.mxu0 0
      %1290 = vmatpush1.bf16.msra.mxu0 0
      %1291 = vmatprep.subr.bf16.mxu0 0
      %1292 = vmatpush1.bf16.msra.mxu0 0
      %1293 = vmatprep.subr.bf16.mxu0 0
      %1294 = vmatpush1.bf16.msra.mxu0 0
      %1295 = vmatprep.subr.bf16.mxu0 0
      %1296 = vmatpush1.bf16.msra.mxu0 0
      %1297 = vmatprep.subr.bf16.mxu0 %v777
      %1298 = vmatpush1.bf16.msra.mxu0 %v776
      %1299 = vmatprep.subr.bf16.mxu0 %v775
      %1300 = vmatpush1.bf16.msra.mxu0 %v774
      %1301 = vmatprep.subr.bf16.mxu0 0
      %1302 = vmatpush2.bf16.msra.mxu0 0
      %1303 = vmatprep.subr.bf16.mxu0 0
      %1304 = vmatpush2.bf16.msra.mxu0 0
      %1305 = vmatprep.subr.bf16.mxu0 0
      %1306 = vmatpush2.bf16.msra.mxu0 0
      %1307 = vmatprep.subr.bf16.mxu0 0
      %1308 = vmatpush2.bf16.msra.mxu0 0
      %1309 = vmatprep.subr.bf16.mxu0 0
      %1310 = vmatpush2.bf16.msra.mxu0 0
      %1311 = vmatprep.subr.bf16.mxu0 0
      %1312 = vmatpush2.bf16.msra.mxu0 0
      %1313 = vmatprep.subr.bf16.mxu0 0
      %1314 = vmatpush2.bf16.msra.mxu0 0
      %1315 = vmatprep.subr.bf16.mxu0 0
      %1316 = vmatpush2.bf16.msra.mxu0 0
      %1317 = vmatprep.mubr.bf16.mxu0 0
      %1318 = vmatmul.mubr.bf16.gmra.mxu0 %v1283
      %v1319 = vpop.f32.mrf.mxu0
      %v1320 = vadd.f32 0.0, %v1319
      %v1321 = vpop.f32.mrf.mxu0
      %v1322 = vadd.f32 0.0, %v1321
      %v1323 = vpop.f32.mrf.mxu0
      %v1324 = vpop.f32.mrf.mxu0
      %1325 = vdwg.mxu0
      %1326 = vrot.lane.b32.xlu0 %v1320, 111
      %v1327 = vpop.permute.xlu0 %1326
      %1328 = vrot.lane.b32.xlu0 %v1322, 111
      %v1329 = vpop.permute.xlu0 %1328
      %vm1330 = vcmp.lt.s32.totalorder %v779, 111
      %v1331 = vsel %vm1330, %v1327, %v1329
      %v1332 = vsel %vm1330, %v1329, %v1327
      %vm1333 = vmand %vm1207, %vm972
      %vm1334 = vmand %vm1208, %vm973
      %v1335 = vsel %vm1333, 1, 0
      %v1336 = vsel %vm1334, 1, 0
      %vm1337 = vcmp.eq.s32.totalorder %v1335, 1
      %vm1338 = vcmp.eq.s32.totalorder %v1336, 1
      %v1339 = vsel %vm1337, %v1331, 0.0
      %v1340 = vsel %vm1338, %v1332, 0.0
      %v1341 = vadd.f32 %v1278, %v1339
      %v1342 = vadd.f32 %v1279, %v1340
      %v1343 = vld [vmem:[%s10] sm:$0xff]
      %1345 = vset.pattern.permute.xlu0 0
      %1346 = vperm.xlu0 %1345, %v1343
      %v1347 = vpop.permute.xlu0 %1346
      %v1349 = vadd.f32 %v1341, %v1347
      %v1350 = vadd.f32 %v1342, %v1347
      %1351 = vst [vmem:[%s386] sm:$0xff] %v1349
      %1352 = vst [vmem:[%s386 + $0x8] sm:$0xff] %v1350
      %p1353 = scmp.lt.s32.totalorder %s22, 1
      %s1354 = scalar_select %p1353, %s22, 1
      %s1355 = smul.addr %s1354, 2
      %s1356 = smul.addr %s1355, 8
      %s1357 = scalar_lea.vmem %s11, %s1356
      // Predicated region
      $region65: #{_lambda_.1} parent=63 // pred_check
        %p1358 = pneg %p276
      $region66: #{_lambda_.1} parent=63 // pred_check_branch
        %1360 = sbr.rel (%p1358) target = $region68
      $region67: #{_lambda_.1} parent=63 // pred_region
        _
      $region68: #{_lambda_.1} parent=63 // pred_fallthru
        _
    $region64: #{_lambda_.1} parent=5 // pred_fallthru
      _
    %p1361 = scmp.le.s32.totalorder 2, %s17
    // Predicated region
    $region69: #{_lambda_.1} parent=5 // pred_check
      %p1362 = pneg %p1361
    $region70: #{_lambda_.1} parent=5 // pred_check_branch
      %1364 = sbr.rel (%p1362) target = $region72
    $region71: #{_lambda_.1} parent=5 // pred_region
      %s1365 = ssub.s32 %s17, 2
      // Predicated region
      $region73: #{_lambda_.1} parent=71 // pred_check
        %p1366 = pneg %p282
      $region74: #{_lambda_.1} parent=71 // pred_check_branch
        %1368 = sbr.rel (%p1366) target = $region76
      $region75: #{_lambda_.1} parent=71 // pred_region
        %p1369 = scmp.lt.s32.totalorder %s23, 1
        %s1370 = scalar_select %p1369, %s23, 1
        %s1371 = smul.addr %s1370, 2
        %s1372 = smul.addr %s1371, 8
        %s1373 = scalar_lea.vmem %s11, %s1372
      $region76: #{_lambda_.1} parent=71 // pred_fallthru
        _
    $region72: #{_lambda_.1} parent=5 // pred_fallthru
      _
  $region6: #{_lambda_.1} parent=0 // loop_footer
    %s21 = sadd.s32 1, %s17
  $region7: #{_lambda_.1} parent=0 // loop_footer_branch
    %16 = sbr.rel target = $region3
  $region8: #{_lambda_.1} parent=0 // loop_exit
    _

</llo_original>
